<compile_context>
chip_gen: v7x
topology: tpu7x:2x2x1
jax: 0.10.0
libtpu: 0.0.40
codegen_flags: <defaults>
</compile_context>

<pallas_src>
import functools

import jax
import jax.numpy as jnp
from jax.experimental import pallas as pl
from jax.experimental.pallas import tpu as pltpu

NDF = 64  # as in the reference module

_MAX_TM = 32        # rows of A per grid step when M is large
_ACC_ELEMS = 16384  # target accumulator size (elements) ~ 16 vregs


def _round_up(x, m):
    return ((x + m - 1) // m) * m


# ----------------------------- Pallas kernel ------------------------------ #
def _rowdot_sigmoid_kernel(a_ref, w_ref, o_ref, *, chunk):
    """o[m, :] = sigmoid(sum_k a[m, k] * w[0, k]), broadcast across 128 lanes.

    a_ref: (tm, K) f32, w_ref: (1, K) f32, o_ref: (tm, 128) f32.
    The K reduction is chunked VPU multiply-accumulate (bounded register
    pressure) followed by one cross-lane (XLU) reduce.  No MXU, no scratch.
    """
    tm, k_total = a_ref.shape
    nchunks = k_total // chunk  # static Python int

    acc = jnp.zeros((tm, chunk), dtype=jnp.float32)
    for c in range(nchunks):  # static trip count -> fully unrolled
        a_c = a_ref[:, pl.ds(c * chunk, chunk)]   # (tm, chunk)
        w_c = w_ref[:, pl.ds(c * chunk, chunk)]   # (1, chunk), sublane-broadcast
        acc = acc + a_c * w_c

    total = jnp.sum(acc, axis=-1, keepdims=True)  # (tm, 1), cross-lane reduce
    out = jax.nn.sigmoid(total)                   # EUP
    o_ref[...] = jnp.broadcast_to(out, o_ref.shape).astype(o_ref.dtype)


def _rowdot_sigmoid(a, w_row):
    """a: (M, K) f32, w_row: (1, K) f32 -> sigmoid(a @ w_row.T): (M,) f32."""
    M, K = a.shape

    # M tiling: single full-array block when small, else 32-row tiles.
    if M <= _MAX_TM:
        tm, Mp = M, M
    else:
        tm = _MAX_TM
        Mp = _round_up(M, tm)

    # Chunk width (multiple of 128 lanes) sized so acc + operands fit in vregs.
    tm8 = max(8, _round_up(tm, 8))
    chunk = max(128, (_ACC_ELEMS // tm8) // 128 * 128)
    Kp = _round_up(K, chunk)

    # No-op padding for the canonical shapes (M <= 32, K = 512*64 = 32768).
    if (Mp, Kp) != (M, K):
        a = jnp.pad(a, ((0, Mp - M), (0, Kp - K)))
    if Kp != K:
        w_row = jnp.pad(w_row, ((0, 0), (0, Kp - K)))

    grid = (Mp // tm,)
    out = pl.pallas_call(
        functools.partial(_rowdot_sigmoid_kernel, chunk=chunk),
        out_shape=jax.ShapeDtypeStruct((Mp, 128), jnp.float32),
        grid_spec=pltpu.PrefetchScalarGridSpec(
            num_scalar_prefetch=0,
            grid=grid,
            in_specs=[
                pl.BlockSpec((tm, Kp), lambda i: (i, 0)),  # A rows
                pl.BlockSpec((1, Kp), lambda i: (0, 0)),   # weight, stays resident
            ],
            out_specs=pl.BlockSpec((tm, 128), lambda i: (i, 0)),
        ),
        compiler_params=pltpu.CompilerParams(
            dimension_semantics=("parallel",),     # M axis -> megacore on v7x
            vmem_limit_bytes=32 * 1024 * 1024,
        ),
    )(a, w_row)
    return out[:M, 0]


# ------------------------------- Glue (JAX) -------------------------------- #
def _im2col_3d(x, kd, kh, kw):
    """General fallback (only used when the conv has more than 1 output pos)."""
    N, C, D, H, W = x.shape
    Do, Ho, Wo = D - kd + 1, H - kh + 1, W - kw + 1
    cols = []
    for dz in range(kd):
        for dy in range(kh):
            for dx in range(kw):
                cols.append(x[:, :, dz:dz + Do, dy:dy + Ho, dx:dx + Wo])
    patches = jnp.stack(cols, axis=2)                     # (N, C, k, Do, Ho, Wo)
    patches = jnp.transpose(patches, (0, 3, 4, 5, 1, 2))  # (N, Do, Ho, Wo, C, k)
    return patches.reshape(N * Do * Ho * Wo, C * kd * kh * kw)


@jax.jit
def discriminator_forward(x, conv5_weight):
    """x: (N, 512, D, H, W) NCDHW; conv5_weight: (1, 512, 4, 4, 4).

    Returns sigmoid(conv3d(x, w, stride=1, padding=0)): (N, 1, D-3, H-3, W-3).
    """
    _, C, kd, kh, kw = conv5_weight.shape
    N, _, D, H, W = x.shape
    Do, Ho, Wo = D - kd + 1, H - kh + 1, W - kw + 1
    K = C * kd * kh * kw

    if (Do, Ho, Wo) == (1, 1, 1):
        # Kernel covers the whole volume: the patch matrix is a free reshape,
        # flattening order (c, z, y, x) matches conv5_weight.reshape(1, K).
        a = x.reshape(N, K)
    else:
        a = _im2col_3d(x, kd, kh, kw)  # pure-JAX glue, not the hot path

    w_row = conv5_weight.reshape(1, K)
    out = _rowdot_sigmoid(a, w_row)                      # (N*Do*Ho*Wo,)
    return out.reshape(N, Do, Ho, Wo)[:, None, :, :, :]  # back to NCDHW


# ------------------------------- Driver ------------------------------------ #
if __name__ == "__main__":
    key = jax.random.PRNGKey(0)
    k_x, k_w = jax.random.split(key)

    # Final DCGAN discriminator stage: (N, ndf*8, 4, 4, 4) -> (N, 1, 1, 1, 1)
    N, C, D, H, W = 2, NDF * 8, 4, 4, 4
    x = jax.random.normal(k_x, (N, C, D, H, W), dtype=jnp.float32)
    conv5_weight = 0.02 * jax.random.normal(k_w, (1, C, 4, 4, 4), dtype=jnp.float32)

    out = discriminator_forward(x, conv5_weight)
    out = jax.block_until_ready(out)

    # Reference: f32 lax conv + sigmoid.
    ref = jax.nn.sigmoid(
        jax.lax.conv_general_dilated(
            x, conv5_weight,
            window_strides=(1, 1, 1),
            padding="VALID",
            dimension_numbers=("NCDHW", "OIDHW", "NCDHW"),
            precision=jax.lax.Precision.HIGHEST,
        )
    )
    assert out.shape == (N, 1, D - 3, H - 3, W - 3), out.shape
    assert jnp.allclose(out, ref, atol=1e-4, rtol=1e-4), float(
        jnp.max(jnp.abs(out - ref)))

    print("KERNEL_OK")
</pallas_src>

<mosaic_0001>
module attributes {stable_mosaic.version = 11 : i64} {
  func.func @_rowdot_sigmoid_kernel(%arg0: i32, %arg1: memref<2x32768xf32, #tpu.memory_space<vmem>>, %arg2: memref<1x32768xf32, #tpu.memory_space<vmem>>, %arg3: memref<2x128xf32, #tpu.memory_space<vmem>>) attributes {dimension_semantics = [#tpu.dimension_semantics<parallel>], iteration_bounds = array<i64: 1>, scalar_prefetch = 0 : i64, scratch_operands = 0 : i64, tpu.core_type = #tpu.core_type<tc>, window_params = [{transform_indices = @transform_0, window_bounds = array<i64: 2, 32768>}, {pipeline_mode = #tpu.pipeline_mode<synchronous>, transform_indices = @transform_1, window_bounds = array<i64: 1, 32768>}, {transform_indices = @transform_2, window_bounds = array<i64: 2, 128>}]} {
    %cst = arith.constant 0.000000e+00 : f32
    %0 = vector.broadcast %cst : f32 to vector<2x2048xf32>
    %c0 = arith.constant 0 : index
    %c0_0 = arith.constant 0 : index
    %1 = vector.load %arg1[%c0, %c0_0] : memref<2x32768xf32, #tpu.memory_space<vmem>>, vector<2x2048xf32>
    %c0_1 = arith.constant 0 : index
    %c0_2 = arith.constant 0 : index
    %2 = vector.load %arg2[%c0_1, %c0_2] : memref<1x32768xf32, #tpu.memory_space<vmem>>, vector<1x2048xf32>
    %3 = vector.broadcast %2 : vector<1x2048xf32> to vector<2x2048xf32>
    %4 = arith.mulf %1, %3 : vector<2x2048xf32>
    %5 = arith.addf %0, %4 : vector<2x2048xf32>
    %c0_3 = arith.constant 0 : index
    %c2048 = arith.constant 2048 : index
    %6 = vector.load %arg1[%c0_3, %c2048] : memref<2x32768xf32, #tpu.memory_space<vmem>>, vector<2x2048xf32>
    %c0_4 = arith.constant 0 : index
    %c2048_5 = arith.constant 2048 : index
    %7 = vector.load %arg2[%c0_4, %c2048_5] : memref<1x32768xf32, #tpu.memory_space<vmem>>, vector<1x2048xf32>
    %8 = vector.broadcast %7 : vector<1x2048xf32> to vector<2x2048xf32>
    %9 = arith.mulf %6, %8 : vector<2x2048xf32>
    %10 = arith.addf %5, %9 : vector<2x2048xf32>
    %c0_6 = arith.constant 0 : index
    %c4096 = arith.constant 4096 : index
    %11 = vector.load %arg1[%c0_6, %c4096] : memref<2x32768xf32, #tpu.memory_space<vmem>>, vector<2x2048xf32>
    %c0_7 = arith.constant 0 : index
    %c4096_8 = arith.constant 4096 : index
    %12 = vector.load %arg2[%c0_7, %c4096_8] : memref<1x32768xf32, #tpu.memory_space<vmem>>, vector<1x2048xf32>
    %13 = vector.broadcast %12 : vector<1x2048xf32> to vector<2x2048xf32>
    %14 = arith.mulf %11, %13 : vector<2x2048xf32>
    %15 = arith.addf %10, %14 : vector<2x2048xf32>
    %c0_9 = arith.constant 0 : index
    %c6144 = arith.constant 6144 : index
    %16 = vector.load %arg1[%c0_9, %c6144] : memref<2x32768xf32, #tpu.memory_space<vmem>>, vector<2x2048xf32>
    %c0_10 = arith.constant 0 : index
    %c6144_11 = arith.constant 6144 : index
    %17 = vector.load %arg2[%c0_10, %c6144_11] : memref<1x32768xf32, #tpu.memory_space<vmem>>, vector<1x2048xf32>
    %18 = vector.broadcast %17 : vector<1x2048xf32> to vector<2x2048xf32>
    %19 = arith.mulf %16, %18 : vector<2x2048xf32>
    %20 = arith.addf %15, %19 : vector<2x2048xf32>
    %c0_12 = arith.constant 0 : index
    %c8192 = arith.constant 8192 : index
    %21 = vector.load %arg1[%c0_12, %c8192] : memref<2x32768xf32, #tpu.memory_space<vmem>>, vector<2x2048xf32>
    %c0_13 = arith.constant 0 : index
    %c8192_14 = arith.constant 8192 : index
    %22 = vector.load %arg2[%c0_13, %c8192_14] : memref<1x32768xf32, #tpu.memory_space<vmem>>, vector<1x2048xf32>
    %23 = vector.broadcast %22 : vector<1x2048xf32> to vector<2x2048xf32>
    %24 = arith.mulf %21, %23 : vector<2x2048xf32>
    %25 = arith.addf %20, %24 : vector<2x2048xf32>
    %c0_15 = arith.constant 0 : index
    %c10240 = arith.constant 10240 : index
    %26 = vector.load %arg1[%c0_15, %c10240] : memref<2x32768xf32, #tpu.memory_space<vmem>>, vector<2x2048xf32>
    %c0_16 = arith.constant 0 : index
    %c10240_17 = arith.constant 10240 : index
    %27 = vector.load %arg2[%c0_16, %c10240_17] : memref<1x32768xf32, #tpu.memory_space<vmem>>, vector<1x2048xf32>
    %28 = vector.broadcast %27 : vector<1x2048xf32> to vector<2x2048xf32>
    %29 = arith.mulf %26, %28 : vector<2x2048xf32>
    %30 = arith.addf %25, %29 : vector<2x2048xf32>
    %c0_18 = arith.constant 0 : index
    %c12288 = arith.constant 12288 : index
    %31 = vector.load %arg1[%c0_18, %c12288] : memref<2x32768xf32, #tpu.memory_space<vmem>>, vector<2x2048xf32>
    %c0_19 = arith.constant 0 : index
    %c12288_20 = arith.constant 12288 : index
    %32 = vector.load %arg2[%c0_19, %c12288_20] : memref<1x32768xf32, #tpu.memory_space<vmem>>, vector<1x2048xf32>
    %33 = vector.broadcast %32 : vector<1x2048xf32> to vector<2x2048xf32>
    %34 = arith.mulf %31, %33 : vector<2x2048xf32>
    %35 = arith.addf %30, %34 : vector<2x2048xf32>
    %c0_21 = arith.constant 0 : index
    %c14336 = arith.constant 14336 : index
    %36 = vector.load %arg1[%c0_21, %c14336] : memref<2x32768xf32, #tpu.memory_space<vmem>>, vector<2x2048xf32>
    %c0_22 = arith.constant 0 : index
    %c14336_23 = arith.constant 14336 : index
    %37 = vector.load %arg2[%c0_22, %c14336_23] : memref<1x32768xf32, #tpu.memory_space<vmem>>, vector<1x2048xf32>
    %38 = vector.broadcast %37 : vector<1x2048xf32> to vector<2x2048xf32>
    %39 = arith.mulf %36, %38 : vector<2x2048xf32>
    %40 = arith.addf %35, %39 : vector<2x2048xf32>
    %c0_24 = arith.constant 0 : index
    %c16384 = arith.constant 16384 : index
    %41 = vector.load %arg1[%c0_24, %c16384] : memref<2x32768xf32, #tpu.memory_space<vmem>>, vector<2x2048xf32>
    %c0_25 = arith.constant 0 : index
    %c16384_26 = arith.constant 16384 : index
    %42 = vector.load %arg2[%c0_25, %c16384_26] : memref<1x32768xf32, #tpu.memory_space<vmem>>, vector<1x2048xf32>
    %43 = vector.broadcast %42 : vector<1x2048xf32> to vector<2x2048xf32>
    %44 = arith.mulf %41, %43 : vector<2x2048xf32>
    %45 = arith.addf %40, %44 : vector<2x2048xf32>
    %c0_27 = arith.constant 0 : index
    %c18432 = arith.constant 18432 : index
    %46 = vector.load %arg1[%c0_27, %c18432] : memref<2x32768xf32, #tpu.memory_space<vmem>>, vector<2x2048xf32>
    %c0_28 = arith.constant 0 : index
    %c18432_29 = arith.constant 18432 : index
    %47 = vector.load %arg2[%c0_28, %c18432_29] : memref<1x32768xf32, #tpu.memory_space<vmem>>, vector<1x2048xf32>
    %48 = vector.broadcast %47 : vector<1x2048xf32> to vector<2x2048xf32>
    %49 = arith.mulf %46, %48 : vector<2x2048xf32>
    %50 = arith.addf %45, %49 : vector<2x2048xf32>
    %c0_30 = arith.constant 0 : index
    %c20480 = arith.constant 20480 : index
    %51 = vector.load %arg1[%c0_30, %c20480] : memref<2x32768xf32, #tpu.memory_space<vmem>>, vector<2x2048xf32>
    %c0_31 = arith.constant 0 : index
    %c20480_32 = arith.constant 20480 : index
    %52 = vector.load %arg2[%c0_31, %c20480_32] : memref<1x32768xf32, #tpu.memory_space<vmem>>, vector<1x2048xf32>
    %53 = vector.broadcast %52 : vector<1x2048xf32> to vector<2x2048xf32>
    %54 = arith.mulf %51, %53 : vector<2x2048xf32>
    %55 = arith.addf %50, %54 : vector<2x2048xf32>
    %c0_33 = arith.constant 0 : index
    %c22528 = arith.constant 22528 : index
    %56 = vector.load %arg1[%c0_33, %c22528] : memref<2x32768xf32, #tpu.memory_space<vmem>>, vector<2x2048xf32>
    %c0_34 = arith.constant 0 : index
    %c22528_35 = arith.constant 22528 : index
    %57 = vector.load %arg2[%c0_34, %c22528_35] : memref<1x32768xf32, #tpu.memory_space<vmem>>, vector<1x2048xf32>
    %58 = vector.broadcast %57 : vector<1x2048xf32> to vector<2x2048xf32>
    %59 = arith.mulf %56, %58 : vector<2x2048xf32>
    %60 = arith.addf %55, %59 : vector<2x2048xf32>
    %c0_36 = arith.constant 0 : index
    %c24576 = arith.constant 24576 : index
    %61 = vector.load %arg1[%c0_36, %c24576] : memref<2x32768xf32, #tpu.memory_space<vmem>>, vector<2x2048xf32>
    %c0_37 = arith.constant 0 : index
    %c24576_38 = arith.constant 24576 : index
    %62 = vector.load %arg2[%c0_37, %c24576_38] : memref<1x32768xf32, #tpu.memory_space<vmem>>, vector<1x2048xf32>
    %63 = vector.broadcast %62 : vector<1x2048xf32> to vector<2x2048xf32>
    %64 = arith.mulf %61, %63 : vector<2x2048xf32>
    %65 = arith.addf %60, %64 : vector<2x2048xf32>
    %c0_39 = arith.constant 0 : index
    %c26624 = arith.constant 26624 : index
    %66 = vector.load %arg1[%c0_39, %c26624] : memref<2x32768xf32, #tpu.memory_space<vmem>>, vector<2x2048xf32>
    %c0_40 = arith.constant 0 : index
    %c26624_41 = arith.constant 26624 : index
    %67 = vector.load %arg2[%c0_40, %c26624_41] : memref<1x32768xf32, #tpu.memory_space<vmem>>, vector<1x2048xf32>
    %68 = vector.broadcast %67 : vector<1x2048xf32> to vector<2x2048xf32>
    %69 = arith.mulf %66, %68 : vector<2x2048xf32>
    %70 = arith.addf %65, %69 : vector<2x2048xf32>
    %c0_42 = arith.constant 0 : index
    %c28672 = arith.constant 28672 : index
    %71 = vector.load %arg1[%c0_42, %c28672] : memref<2x32768xf32, #tpu.memory_space<vmem>>, vector<2x2048xf32>
    %c0_43 = arith.constant 0 : index
    %c28672_44 = arith.constant 28672 : index
    %72 = vector.load %arg2[%c0_43, %c28672_44] : memref<1x32768xf32, #tpu.memory_space<vmem>>, vector<1x2048xf32>
    %73 = vector.broadcast %72 : vector<1x2048xf32> to vector<2x2048xf32>
    %74 = arith.mulf %71, %73 : vector<2x2048xf32>
    %75 = arith.addf %70, %74 : vector<2x2048xf32>
    %c0_45 = arith.constant 0 : index
    %c30720 = arith.constant 30720 : index
    %76 = vector.load %arg1[%c0_45, %c30720] : memref<2x32768xf32, #tpu.memory_space<vmem>>, vector<2x2048xf32>
    %c0_46 = arith.constant 0 : index
    %c30720_47 = arith.constant 30720 : index
    %77 = vector.load %arg2[%c0_46, %c30720_47] : memref<1x32768xf32, #tpu.memory_space<vmem>>, vector<1x2048xf32>
    %78 = vector.broadcast %77 : vector<1x2048xf32> to vector<2x2048xf32>
    %79 = arith.mulf %76, %78 : vector<2x2048xf32>
    %80 = arith.addf %75, %79 : vector<2x2048xf32>
    %cst_48 = arith.constant dense<0.000000e+00> : vector<2xf32>
    %81 = vector.multi_reduction <add>, %80, %cst_48 [1] : vector<2x2048xf32> to vector<2xf32>
    %82 = vector.shape_cast %81 : vector<2xf32> to vector<2x1xf32>
    %83 = arith.negf %82 : vector<2x1xf32>
    %84 = math.exp %83 : vector<2x1xf32>
    %cst_49 = arith.constant 1.000000e+00 : f32
    %85 = vector.broadcast %cst_49 : f32 to vector<2x1xf32>
    %86 = arith.addf %85, %84 : vector<2x1xf32>
    %87 = arith.divf %85, %86 : vector<2x1xf32>
    %88 = vector.shape_cast %87 : vector<2x1xf32> to vector<2x1xf32>
    %89 = vector.broadcast %88 : vector<2x1xf32> to vector<2x128xf32>
    %c0_50 = arith.constant 0 : index
    %c0_51 = arith.constant 0 : index
    %90 = vector.load %arg3[%c0_50, %c0_51] : memref<2x128xf32, #tpu.memory_space<vmem>>, vector<2x128xf32>
    tpu.vector_store %arg3[%c0_50, %c0_51], %89 {strides = array<i32>} : memref<2x128xf32, #tpu.memory_space<vmem>>, vector<2x128xf32>,
    return
  }
  func.func @transform_0(%arg0: i32) -> (i32, i32) {
    %c0_i32 = arith.constant 0 : i32
    %c0_i32_0 = arith.constant 0 : i32
    return %arg0, %c0_i32 : i32, i32
  }
  func.func @transform_1(%arg0: i32) -> (i32, i32) {
    %c0_i32 = arith.constant 0 : i32
    %c0_i32_0 = arith.constant 0 : i32
    %c0_i32_1 = arith.constant 0 : i32
    return %c0_i32, %c0_i32_0 : i32, i32
  }
  func.func @transform_2(%arg0: i32) -> (i32, i32) {
    %c0_i32 = arith.constant 0 : i32
    %c0_i32_0 = arith.constant 0 : i32
    return %arg0, %c0_i32 : i32, i32
  }
}

</mosaic_0001>

<llo_original>
// kernel: discriminator_forward.1
$region0: #{discriminator_forward.1}
  #allocation0 [shape = 'u32[]', space=smem, size = 0x4, offset = 0x4, fixed_abs, tag = 'smem constant byte address 0x4 - core index']
  #allocation1 [shape = 'u32[144,128]{1,0:T(1,128)}', space=vmem, size = 0x12000, scoped, tag = 'internal scratch']
  %s0 = inlined_call_operand.vmem [shape: f32[2,32768], index: 0, kind: input, shape index: {}]
  %s1 = inlined_call_operand.vmem [shape: f32[1,32768], index: 1, kind: input, shape index: {}]
  %s2 = inlined_call_operand.vmem [shape: f32[2,128], index: 2, kind: output, shape index: {}]
  %s3 = sld [smem:[#allocation0]]
  $region18: #{discriminator_forward.1} parent=0
    _
  %s5 = ssub.s32 1, %s3
  %s6 = scalar_select 0, %s5, %s3
  // Predicated region
  $region2: #{discriminator_forward.1} parent=0 // pred_check
    _
  $region3: #{discriminator_forward.1} parent=0 // pred_check_branch
    %8 = sbr.rel (0) target = $region5
  $region4: #{discriminator_forward.1} parent=0 // pred_region
    _
  $region5: #{discriminator_forward.1} parent=0 // pred_fallthru
    _
  // Predicated region
  $region6: #{discriminator_forward.1} parent=0 // pred_check
    _
  $region7: #{discriminator_forward.1} parent=0 // pred_check_branch
    %10 = sbr.rel (0) target = $region9
  $region8: #{discriminator_forward.1} parent=0 // pred_region
    _
  $region9: #{discriminator_forward.1} parent=0 // pred_fallthru
    _
  %v11 = vld [vmem:[%s0] sm:$0xff]
  %v12 = vld [vmem:[%s0 + $0x8] sm:$0xff]
  %v13 = vld [vmem:[%s0 + $0x10] sm:$0xff]
  %v14 = vld [vmem:[%s0 + $0x18] sm:$0xff]
  %v15 = vld [vmem:[%s1] sm:$0xff]
  %v16 = vld [vmem:[%s1 + $0x8] sm:$0xff]
  %v19 = vlaneseq
  %v20 = vshrl.u32 %v19, 7
  %v21 = vsub.s32 0, %v20
  %v22 = vrot.slane %v15, %v21
  %v23 = vlaneseq
  %v24 = vshrl.u32 %v23, 7
  %v25 = vsub.s32 1, %v24
  %v26 = vrot.slane %v15, %v25
  %v27 = vlaneseq
  %v28 = vshrl.u32 %v27, 7
  %v29 = vsub.s32 2, %v28
  %v30 = vrot.slane %v15, %v29
  %v31 = vlaneseq
  %v32 = vshrl.u32 %v31, 7
  %v33 = vsub.s32 3, %v32
  %v34 = vrot.slane %v15, %v33
  %v35 = vlaneseq
  %v36 = vshrl.u32 %v35, 7
  %v37 = vsub.s32 4, %v36
  %v38 = vrot.slane %v15, %v37
  %v39 = vlaneseq
  %v40 = vshrl.u32 %v39, 7
  %v41 = vsub.s32 5, %v40
  %v42 = vrot.slane %v15, %v41
  %v43 = vlaneseq
  %v44 = vshrl.u32 %v43, 7
  %v45 = vsub.s32 6, %v44
  %v46 = vrot.slane %v15, %v45
  %v47 = vlaneseq
  %v48 = vshrl.u32 %v47, 7
  %v49 = vsub.s32 7, %v48
  %v50 = vrot.slane %v15, %v49
  %v51 = vlaneseq
  %v52 = vshrl.u32 %v51, 7
  %v53 = vsub.s32 0, %v52
  %v54 = vrot.slane %v16, %v53
  %v55 = vlaneseq
  %v56 = vshrl.u32 %v55, 7
  %v57 = vsub.s32 1, %v56
  %v58 = vrot.slane %v16, %v57
  %v59 = vlaneseq
  %v60 = vshrl.u32 %v59, 7
  %v61 = vsub.s32 2, %v60
  %v62 = vrot.slane %v16, %v61
  %v63 = vlaneseq
  %v64 = vshrl.u32 %v63, 7
  %v65 = vsub.s32 3, %v64
  %v66 = vrot.slane %v16, %v65
  %v67 = vlaneseq
  %v68 = vshrl.u32 %v67, 7
  %v69 = vsub.s32 4, %v68
  %v70 = vrot.slane %v16, %v69
  %v71 = vlaneseq
  %v72 = vshrl.u32 %v71, 7
  %v73 = vsub.s32 5, %v72
  %v74 = vrot.slane %v16, %v73
  %v75 = vlaneseq
  %v76 = vshrl.u32 %v75, 7
  %v77 = vsub.s32 6, %v76
  %v78 = vrot.slane %v16, %v77
  %v79 = vlaneseq
  %v80 = vshrl.u32 %v79, 7
  %v81 = vsub.s32 7, %v80
  %v82 = vrot.slane %v16, %v81
  %v83 = vcombine.low %v22, %v26
  %v84 = vcombine.low %v30, %v34
  %v86 = vunpack.c.l.s4 1983009808
  %v87 = vunpack.c.0.s8 %v86
  %v88 = vlaneseq
  %v89 = vshrl.u32 %v88, 7
  %v90 = vsub.s32 %v87, %v89
  %v91 = vrot.slane %v83, %v90
  %v93 = vunpack.c.l.s4 1983009808
  %v94 = vunpack.c.0.s8 %v93
  %v95 = vlaneseq
  %v96 = vshrl.u32 %v95, 7
  %v97 = vsub.s32 %v94, %v96
  %v98 = vrot.slane %v84, %v97
  %v99 = vcombine.low %v91, %v98
  %v100 = vcombine.low %v38, %v42
  %v101 = vcombine.low %v46, %v50
  %v103 = vunpack.c.l.s4 1983009808
  %v104 = vunpack.c.0.s8 %v103
  %v105 = vlaneseq
  %v106 = vshrl.u32 %v105, 7
  %v107 = vsub.s32 %v104, %v106
  %v108 = vrot.slane %v100, %v107
  %v110 = vunpack.c.l.s4 1983009808
  %v111 = vunpack.c.0.s8 %v110
  %v112 = vlaneseq
  %v113 = vshrl.u32 %v112, 7
  %v114 = vsub.s32 %v111, %v113
  %v115 = vrot.slane %v101, %v114
  %v116 = vcombine.low %v108, %v115
  %v117 = vcombine.low %v54, %v58
  %v118 = vcombine.low %v62, %v66
  %v120 = vunpack.c.l.s4 1983009808
  %v121 = vunpack.c.0.s8 %v120
  %v122 = vlaneseq
  %v123 = vshrl.u32 %v122, 7
  %v124 = vsub.s32 %v121, %v123
  %v125 = vrot.slane %v117, %v124
  %v127 = vunpack.c.l.s4 1983009808
  %v128 = vunpack.c.0.s8 %v127
  %v129 = vlaneseq
  %v130 = vshrl.u32 %v129, 7
  %v131 = vsub.s32 %v128, %v130
  %v132 = vrot.slane %v118, %v131
  %v133 = vcombine.low %v125, %v132
  %v134 = vcombine.low %v70, %v74
  %v135 = vcombine.low %v78, %v82
  %v137 = vunpack.c.l.s4 1983009808
  %v138 = vunpack.c.0.s8 %v137
  %v139 = vlaneseq
  %v140 = vshrl.u32 %v139, 7
  %v141 = vsub.s32 %v138, %v140
  %v142 = vrot.slane %v134, %v141
  %v144 = vunpack.c.l.s4 1983009808
  %v145 = vunpack.c.0.s8 %v144
  %v146 = vlaneseq
  %v147 = vshrl.u32 %v146, 7
  %v148 = vsub.s32 %v145, %v147
  %v149 = vrot.slane %v135, %v148
  %v150 = vcombine.low %v142, %v149
  %v155 = vmul.f32 %v11, %v99
  %v156 = vmul.f32 %v12, %v116
  %v157 = vmul.f32 %v13, %v133
  %v158 = vmul.f32 %v14, %v150
  %v159 = vadd.f32 %v155, 0.0
  %v160 = vadd.f32 %v156, 0.0
  %v161 = vadd.f32 %v157, 0.0
  %v162 = vadd.f32 %v158, 0.0
  %v163 = vld [vmem:[%s0 + $0x20] sm:$0xff]
  %v164 = vld [vmem:[%s0 + $0x28] sm:$0xff]
  %v165 = vld [vmem:[%s0 + $0x30] sm:$0xff]
  %v166 = vld [vmem:[%s0 + $0x38] sm:$0xff]
  %v167 = vld [vmem:[%s1 + $0x10] sm:$0xff]
  %v168 = vld [vmem:[%s1 + $0x18] sm:$0xff]
  %v171 = vlaneseq
  %v172 = vshrl.u32 %v171, 7
  %v173 = vsub.s32 0, %v172
  %v174 = vrot.slane %v167, %v173
  %v175 = vlaneseq
  %v176 = vshrl.u32 %v175, 7
  %v177 = vsub.s32 1, %v176
  %v178 = vrot.slane %v167, %v177
  %v179 = vlaneseq
  %v180 = vshrl.u32 %v179, 7
  %v181 = vsub.s32 2, %v180
  %v182 = vrot.slane %v167, %v181
  %v183 = vlaneseq
  %v184 = vshrl.u32 %v183, 7
  %v185 = vsub.s32 3, %v184
  %v186 = vrot.slane %v167, %v185
  %v187 = vlaneseq
  %v188 = vshrl.u32 %v187, 7
  %v189 = vsub.s32 4, %v188
  %v190 = vrot.slane %v167, %v189
  %v191 = vlaneseq
  %v192 = vshrl.u32 %v191, 7
  %v193 = vsub.s32 5, %v192
  %v194 = vrot.slane %v167, %v193
  %v195 = vlaneseq
  %v196 = vshrl.u32 %v195, 7
  %v197 = vsub.s32 6, %v196
  %v198 = vrot.slane %v167, %v197
  %v199 = vlaneseq
  %v200 = vshrl.u32 %v199, 7
  %v201 = vsub.s32 7, %v200
  %v202 = vrot.slane %v167, %v201
  %v203 = vlaneseq
  %v204 = vshrl.u32 %v203, 7
  %v205 = vsub.s32 0, %v204
  %v206 = vrot.slane %v168, %v205
  %v207 = vlaneseq
  %v208 = vshrl.u32 %v207, 7
  %v209 = vsub.s32 1, %v208
  %v210 = vrot.slane %v168, %v209
  %v211 = vlaneseq
  %v212 = vshrl.u32 %v211, 7
  %v213 = vsub.s32 2, %v212
  %v214 = vrot.slane %v168, %v213
  %v215 = vlaneseq
  %v216 = vshrl.u32 %v215, 7
  %v217 = vsub.s32 3, %v216
  %v218 = vrot.slane %v168, %v217
  %v219 = vlaneseq
  %v220 = vshrl.u32 %v219, 7
  %v221 = vsub.s32 4, %v220
  %v222 = vrot.slane %v168, %v221
  %v223 = vlaneseq
  %v224 = vshrl.u32 %v223, 7
  %v225 = vsub.s32 5, %v224
  %v226 = vrot.slane %v168, %v225
  %v227 = vlaneseq
  %v228 = vshrl.u32 %v227, 7
  %v229 = vsub.s32 6, %v228
  %v230 = vrot.slane %v168, %v229
  %v231 = vlaneseq
  %v232 = vshrl.u32 %v231, 7
  %v233 = vsub.s32 7, %v232
  %v234 = vrot.slane %v168, %v233
  %v235 = vcombine.low %v174, %v178
  %v236 = vcombine.low %v182, %v186
  %v238 = vunpack.c.l.s4 1983009808
  %v239 = vunpack.c.0.s8 %v238
  %v240 = vlaneseq
  %v241 = vshrl.u32 %v240, 7
  %v242 = vsub.s32 %v239, %v241
  %v243 = vrot.slane %v235, %v242
  %v245 = vunpack.c.l.s4 1983009808
  %v246 = vunpack.c.0.s8 %v245
  %v247 = vlaneseq
  %v248 = vshrl.u32 %v247, 7
  %v249 = vsub.s32 %v246, %v248
  %v250 = vrot.slane %v236, %v249
  %v251 = vcombine.low %v243, %v250
  %v252 = vcombine.low %v190, %v194
  %v253 = vcombine.low %v198, %v202
  %v255 = vunpack.c.l.s4 1983009808
  %v256 = vunpack.c.0.s8 %v255
  %v257 = vlaneseq
  %v258 = vshrl.u32 %v257, 7
  %v259 = vsub.s32 %v256, %v258
  %v260 = vrot.slane %v252, %v259
  %v262 = vunpack.c.l.s4 1983009808
  %v263 = vunpack.c.0.s8 %v262
  %v264 = vlaneseq
  %v265 = vshrl.u32 %v264, 7
  %v266 = vsub.s32 %v263, %v265
  %v267 = vrot.slane %v253, %v266
  %v268 = vcombine.low %v260, %v267
  %v269 = vcombine.low %v206, %v210
  %v270 = vcombine.low %v214, %v218
  %v272 = vunpack.c.l.s4 1983009808
  %v273 = vunpack.c.0.s8 %v272
  %v274 = vlaneseq
  %v275 = vshrl.u32 %v274, 7
  %v276 = vsub.s32 %v273, %v275
  %v277 = vrot.slane %v269, %v276
  %v279 = vunpack.c.l.s4 1983009808
  %v280 = vunpack.c.0.s8 %v279
  %v281 = vlaneseq
  %v282 = vshrl.u32 %v281, 7
  %v283 = vsub.s32 %v280, %v282
  %v284 = vrot.slane %v270, %v283
  %v285 = vcombine.low %v277, %v284
  %v286 = vcombine.low %v222, %v226
  %v287 = vcombine.low %v230, %v234
  %v289 = vunpack.c.l.s4 1983009808
  %v290 = vunpack.c.0.s8 %v289
  %v291 = vlaneseq
  %v292 = vshrl.u32 %v291, 7
  %v293 = vsub.s32 %v290, %v292
  %v294 = vrot.slane %v286, %v293
  %v296 = vunpack.c.l.s4 1983009808
  %v297 = vunpack.c.0.s8 %v296
  %v298 = vlaneseq
  %v299 = vshrl.u32 %v298, 7
  %v300 = vsub.s32 %v297, %v299
  %v301 = vrot.slane %v287, %v300
  %v302 = vcombine.low %v294, %v301
  %v307 = vmul.f32 %v163, %v251
  %v308 = vmul.f32 %v164, %v268
  %v309 = vmul.f32 %v165, %v285
  %v310 = vmul.f32 %v166, %v302
  %v311 = vadd.f32 %v159, %v307
  %v312 = vadd.f32 %v160, %v308
  %v313 = vadd.f32 %v161, %v309
  %v314 = vadd.f32 %v162, %v310
  %v315 = vld [vmem:[%s0 + $0x40] sm:$0xff]
  %v316 = vld [vmem:[%s0 + $0x48] sm:$0xff]
  %v317 = vld [vmem:[%s0 + $0x50] sm:$0xff]
  %v318 = vld [vmem:[%s0 + $0x58] sm:$0xff]
  %v319 = vld [vmem:[%s1 + $0x20] sm:$0xff]
  %v320 = vld [vmem:[%s1 + $0x28] sm:$0xff]
  %v323 = vlaneseq
  %v324 = vshrl.u32 %v323, 7
  %v325 = vsub.s32 0, %v324
  %v326 = vrot.slane %v319, %v325
  %v327 = vlaneseq
  %v328 = vshrl.u32 %v327, 7
  %v329 = vsub.s32 1, %v328
  %v330 = vrot.slane %v319, %v329
  %v331 = vlaneseq
  %v332 = vshrl.u32 %v331, 7
  %v333 = vsub.s32 2, %v332
  %v334 = vrot.slane %v319, %v333
  %v335 = vlaneseq
  %v336 = vshrl.u32 %v335, 7
  %v337 = vsub.s32 3, %v336
  %v338 = vrot.slane %v319, %v337
  %v339 = vlaneseq
  %v340 = vshrl.u32 %v339, 7
  %v341 = vsub.s32 4, %v340
  %v342 = vrot.slane %v319, %v341
  %v343 = vlaneseq
  %v344 = vshrl.u32 %v343, 7
  %v345 = vsub.s32 5, %v344
  %v346 = vrot.slane %v319, %v345
  %v347 = vlaneseq
  %v348 = vshrl.u32 %v347, 7
  %v349 = vsub.s32 6, %v348
  %v350 = vrot.slane %v319, %v349
  %v351 = vlaneseq
  %v352 = vshrl.u32 %v351, 7
  %v353 = vsub.s32 7, %v352
  %v354 = vrot.slane %v319, %v353
  %v355 = vlaneseq
  %v356 = vshrl.u32 %v355, 7
  %v357 = vsub.s32 0, %v356
  %v358 = vrot.slane %v320, %v357
  %v359 = vlaneseq
  %v360 = vshrl.u32 %v359, 7
  %v361 = vsub.s32 1, %v360
  %v362 = vrot.slane %v320, %v361
  %v363 = vlaneseq
  %v364 = vshrl.u32 %v363, 7
  %v365 = vsub.s32 2, %v364
  %v366 = vrot.slane %v320, %v365
  %v367 = vlaneseq
  %v368 = vshrl.u32 %v367, 7
  %v369 = vsub.s32 3, %v368
  %v370 = vrot.slane %v320, %v369
  %v371 = vlaneseq
  %v372 = vshrl.u32 %v371, 7
  %v373 = vsub.s32 4, %v372
  %v374 = vrot.slane %v320, %v373
  %v375 = vlaneseq
  %v376 = vshrl.u32 %v375, 7
  %v377 = vsub.s32 5, %v376
  %v378 = vrot.slane %v320, %v377
  %v379 = vlaneseq
  %v380 = vshrl.u32 %v379, 7
  %v381 = vsub.s32 6, %v380
  %v382 = vrot.slane %v320, %v381
  %v383 = vlaneseq
  %v384 = vshrl.u32 %v383, 7
  %v385 = vsub.s32 7, %v384
  %v386 = vrot.slane %v320, %v385
  %v387 = vcombine.low %v326, %v330
  %v388 = vcombine.low %v334, %v338
  %v390 = vunpack.c.l.s4 1983009808
  %v391 = vunpack.c.0.s8 %v390
  %v392 = vlaneseq
  %v393 = vshrl.u32 %v392, 7
  %v394 = vsub.s32 %v391, %v393
  %v395 = vrot.slane %v387, %v394
  %v397 = vunpack.c.l.s4 1983009808
  %v398 = vunpack.c.0.s8 %v397
  %v399 = vlaneseq
  %v400 = vshrl.u32 %v399, 7
  %v401 = vsub.s32 %v398, %v400
  %v402 = vrot.slane %v388, %v401
  %v403 = vcombine.low %v395, %v402
  %v404 = vcombine.low %v342, %v346
  %v405 = vcombine.low %v350, %v354
  %v407 = vunpack.c.l.s4 1983009808
  %v408 = vunpack.c.0.s8 %v407
  %v409 = vlaneseq
  %v410 = vshrl.u32 %v409, 7
  %v411 = vsub.s32 %v408, %v410
  %v412 = vrot.slane %v404, %v411
  %v414 = vunpack.c.l.s4 1983009808
  %v415 = vunpack.c.0.s8 %v414
  %v416 = vlaneseq
  %v417 = vshrl.u32 %v416, 7
  %v418 = vsub.s32 %v415, %v417
  %v419 = vrot.slane %v405, %v418
  %v420 = vcombine.low %v412, %v419
  %v421 = vcombine.low %v358, %v362
  %v422 = vcombine.low %v366, %v370
  %v424 = vunpack.c.l.s4 1983009808
  %v425 = vunpack.c.0.s8 %v424
  %v426 = vlaneseq
  %v427 = vshrl.u32 %v426, 7
  %v428 = vsub.s32 %v425, %v427
  %v429 = vrot.slane %v421, %v428
  %v431 = vunpack.c.l.s4 1983009808
  %v432 = vunpack.c.0.s8 %v431
  %v433 = vlaneseq
  %v434 = vshrl.u32 %v433, 7
  %v435 = vsub.s32 %v432, %v434
  %v436 = vrot.slane %v422, %v435
  %v437 = vcombine.low %v429, %v436
  %v438 = vcombine.low %v374, %v378
  %v439 = vcombine.low %v382, %v386
  %v441 = vunpack.c.l.s4 1983009808
  %v442 = vunpack.c.0.s8 %v441
  %v443 = vlaneseq
  %v444 = vshrl.u32 %v443, 7
  %v445 = vsub.s32 %v442, %v444
  %v446 = vrot.slane %v438, %v445
  %v448 = vunpack.c.l.s4 1983009808
  %v449 = vunpack.c.0.s8 %v448
  %v450 = vlaneseq
  %v451 = vshrl.u32 %v450, 7
  %v452 = vsub.s32 %v449, %v451
  %v453 = vrot.slane %v439, %v452
  %v454 = vcombine.low %v446, %v453
  %v459 = vmul.f32 %v315, %v403
  %v460 = vmul.f32 %v316, %v420
  %v461 = vmul.f32 %v317, %v437
  %v462 = vmul.f32 %v318, %v454
  %v463 = vadd.f32 %v311, %v459
  %v464 = vadd.f32 %v312, %v460
  %v465 = vadd.f32 %v313, %v461
  %v466 = vadd.f32 %v314, %v462
  %v467 = vld [vmem:[%s0 + $0x60] sm:$0xff]
  %v468 = vld [vmem:[%s0 + $0x68] sm:$0xff]
  %v469 = vld [vmem:[%s0 + $0x70] sm:$0xff]
  %v470 = vld [vmem:[%s0 + $0x78] sm:$0xff]
  %v471 = vld [vmem:[%s1 + $0x30] sm:$0xff]
  %v472 = vld [vmem:[%s1 + $0x38] sm:$0xff]
  %v475 = vlaneseq
  %v476 = vshrl.u32 %v475, 7
  %v477 = vsub.s32 0, %v476
  %v478 = vrot.slane %v471, %v477
  %v479 = vlaneseq
  %v480 = vshrl.u32 %v479, 7
  %v481 = vsub.s32 1, %v480
  %v482 = vrot.slane %v471, %v481
  %v483 = vlaneseq
  %v484 = vshrl.u32 %v483, 7
  %v485 = vsub.s32 2, %v484
  %v486 = vrot.slane %v471, %v485
  %v487 = vlaneseq
  %v488 = vshrl.u32 %v487, 7
  %v489 = vsub.s32 3, %v488
  %v490 = vrot.slane %v471, %v489
  %v491 = vlaneseq
  %v492 = vshrl.u32 %v491, 7
  %v493 = vsub.s32 4, %v492
  %v494 = vrot.slane %v471, %v493
  %v495 = vlaneseq
  %v496 = vshrl.u32 %v495, 7
  %v497 = vsub.s32 5, %v496
  %v498 = vrot.slane %v471, %v497
  %v499 = vlaneseq
  %v500 = vshrl.u32 %v499, 7
  %v501 = vsub.s32 6, %v500
  %v502 = vrot.slane %v471, %v501
  %v503 = vlaneseq
  %v504 = vshrl.u32 %v503, 7
  %v505 = vsub.s32 7, %v504
  %v506 = vrot.slane %v471, %v505
  %v507 = vlaneseq
  %v508 = vshrl.u32 %v507, 7
  %v509 = vsub.s32 0, %v508
  %v510 = vrot.slane %v472, %v509
  %v511 = vlaneseq
  %v512 = vshrl.u32 %v511, 7
  %v513 = vsub.s32 1, %v512
  %v514 = vrot.slane %v472, %v513
  %v515 = vlaneseq
  %v516 = vshrl.u32 %v515, 7
  %v517 = vsub.s32 2, %v516
  %v518 = vrot.slane %v472, %v517
  %v519 = vlaneseq
  %v520 = vshrl.u32 %v519, 7
  %v521 = vsub.s32 3, %v520
  %v522 = vrot.slane %v472, %v521
  %v523 = vlaneseq
  %v524 = vshrl.u32 %v523, 7
  %v525 = vsub.s32 4, %v524
  %v526 = vrot.slane %v472, %v525
  %v527 = vlaneseq
  %v528 = vshrl.u32 %v527, 7
  %v529 = vsub.s32 5, %v528
  %v530 = vrot.slane %v472, %v529
  %v531 = vlaneseq
  %v532 = vshrl.u32 %v531, 7
  %v533 = vsub.s32 6, %v532
  %v534 = vrot.slane %v472, %v533
  %v535 = vlaneseq
  %v536 = vshrl.u32 %v535, 7
  %v537 = vsub.s32 7, %v536
  %v538 = vrot.slane %v472, %v537
  %v539 = vcombine.low %v478, %v482
  %v540 = vcombine.low %v486, %v490
  %v542 = vunpack.c.l.s4 1983009808
  %v543 = vunpack.c.0.s8 %v542
  %v544 = vlaneseq
  %v545 = vshrl.u32 %v544, 7
  %v546 = vsub.s32 %v543, %v545
  %v547 = vrot.slane %v539, %v546
  %v549 = vunpack.c.l.s4 1983009808
  %v550 = vunpack.c.0.s8 %v549
  %v551 = vlaneseq
  %v552 = vshrl.u32 %v551, 7
  %v553 = vsub.s32 %v550, %v552
  %v554 = vrot.slane %v540, %v553
  %v555 = vcombine.low %v547, %v554
  %v556 = vcombine.low %v494, %v498
  %v557 = vcombine.low %v502, %v506
  %v559 = vunpack.c.l.s4 1983009808
  %v560 = vunpack.c.0.s8 %v559
  %v561 = vlaneseq
  %v562 = vshrl.u32 %v561, 7
  %v563 = vsub.s32 %v560, %v562
  %v564 = vrot.slane %v556, %v563
  %v566 = vunpack.c.l.s4 1983009808
  %v567 = vunpack.c.0.s8 %v566
  %v568 = vlaneseq
  %v569 = vshrl.u32 %v568, 7
  %v570 = vsub.s32 %v567, %v569
  %v571 = vrot.slane %v557, %v570
  %v572 = vcombine.low %v564, %v571
  %v573 = vcombine.low %v510, %v514
  %v574 = vcombine.low %v518, %v522
  %v576 = vunpack.c.l.s4 1983009808
  %v577 = vunpack.c.0.s8 %v576
  %v578 = vlaneseq
  %v579 = vshrl.u32 %v578, 7
  %v580 = vsub.s32 %v577, %v579
  %v581 = vrot.slane %v573, %v580
  %v583 = vunpack.c.l.s4 1983009808
  %v584 = vunpack.c.0.s8 %v583
  %v585 = vlaneseq
  %v586 = vshrl.u32 %v585, 7
  %v587 = vsub.s32 %v584, %v586
  %v588 = vrot.slane %v574, %v587
  %v589 = vcombine.low %v581, %v588
  %v590 = vcombine.low %v526, %v530
  %v591 = vcombine.low %v534, %v538
  %v593 = vunpack.c.l.s4 1983009808
  %v594 = vunpack.c.0.s8 %v593
  %v595 = vlaneseq
  %v596 = vshrl.u32 %v595, 7
  %v597 = vsub.s32 %v594, %v596
  %v598 = vrot.slane %v590, %v597
  %v600 = vunpack.c.l.s4 1983009808
  %v601 = vunpack.c.0.s8 %v600
  %v602 = vlaneseq
  %v603 = vshrl.u32 %v602, 7
  %v604 = vsub.s32 %v601, %v603
  %v605 = vrot.slane %v591, %v604
  %v606 = vcombine.low %v598, %v605
  %v611 = vmul.f32 %v467, %v555
  %v612 = vmul.f32 %v468, %v572
  %v613 = vmul.f32 %v469, %v589
  %v614 = vmul.f32 %v470, %v606
  %v615 = vadd.f32 %v463, %v611
  %v616 = vadd.f32 %v464, %v612
  %v617 = vadd.f32 %v465, %v613
  %v618 = vadd.f32 %v466, %v614
  %v619 = vld [vmem:[%s0 + $0x80] sm:$0xff]
  %v620 = vld [vmem:[%s0 + $0x88] sm:$0xff]
  %v621 = vld [vmem:[%s0 + $0x90] sm:$0xff]
  %v622 = vld [vmem:[%s0 + $0x98] sm:$0xff]
  %v623 = vld [vmem:[%s1 + $0x40] sm:$0xff]
  %v624 = vld [vmem:[%s1 + $0x48] sm:$0xff]
  %v627 = vlaneseq
  %v628 = vshrl.u32 %v627, 7
  %v629 = vsub.s32 0, %v628
  %v630 = vrot.slane %v623, %v629
  %v631 = vlaneseq
  %v632 = vshrl.u32 %v631, 7
  %v633 = vsub.s32 1, %v632
  %v634 = vrot.slane %v623, %v633
  %v635 = vlaneseq
  %v636 = vshrl.u32 %v635, 7
  %v637 = vsub.s32 2, %v636
  %v638 = vrot.slane %v623, %v637
  %v639 = vlaneseq
  %v640 = vshrl.u32 %v639, 7
  %v641 = vsub.s32 3, %v640
  %v642 = vrot.slane %v623, %v641
  %v643 = vlaneseq
  %v644 = vshrl.u32 %v643, 7
  %v645 = vsub.s32 4, %v644
  %v646 = vrot.slane %v623, %v645
  %v647 = vlaneseq
  %v648 = vshrl.u32 %v647, 7
  %v649 = vsub.s32 5, %v648
  %v650 = vrot.slane %v623, %v649
  %v651 = vlaneseq
  %v652 = vshrl.u32 %v651, 7
  %v653 = vsub.s32 6, %v652
  %v654 = vrot.slane %v623, %v653
  %v655 = vlaneseq
  %v656 = vshrl.u32 %v655, 7
  %v657 = vsub.s32 7, %v656
  %v658 = vrot.slane %v623, %v657
  %v659 = vlaneseq
  %v660 = vshrl.u32 %v659, 7
  %v661 = vsub.s32 0, %v660
  %v662 = vrot.slane %v624, %v661
  %v663 = vlaneseq
  %v664 = vshrl.u32 %v663, 7
  %v665 = vsub.s32 1, %v664
  %v666 = vrot.slane %v624, %v665
  %v667 = vlaneseq
  %v668 = vshrl.u32 %v667, 7
  %v669 = vsub.s32 2, %v668
  %v670 = vrot.slane %v624, %v669
  %v671 = vlaneseq
  %v672 = vshrl.u32 %v671, 7
  %v673 = vsub.s32 3, %v672
  %v674 = vrot.slane %v624, %v673
  %v675 = vlaneseq
  %v676 = vshrl.u32 %v675, 7
  %v677 = vsub.s32 4, %v676
  %v678 = vrot.slane %v624, %v677
  %v679 = vlaneseq
  %v680 = vshrl.u32 %v679, 7
  %v681 = vsub.s32 5, %v680
  %v682 = vrot.slane %v624, %v681
  %v683 = vlaneseq
  %v684 = vshrl.u32 %v683, 7
  %v685 = vsub.s32 6, %v684
  %v686 = vrot.slane %v624, %v685
  %v687 = vlaneseq
  %v688 = vshrl.u32 %v687, 7
  %v689 = vsub.s32 7, %v688
  %v690 = vrot.slane %v624, %v689
  %v691 = vcombine.low %v630, %v634
  %v692 = vcombine.low %v638, %v642
  %v694 = vunpack.c.l.s4 1983009808
  %v695 = vunpack.c.0.s8 %v694
  %v696 = vlaneseq
  %v697 = vshrl.u32 %v696, 7
  %v698 = vsub.s32 %v695, %v697
  %v699 = vrot.slane %v691, %v698
  %v701 = vunpack.c.l.s4 1983009808
  %v702 = vunpack.c.0.s8 %v701
  %v703 = vlaneseq
  %v704 = vshrl.u32 %v703, 7
  %v705 = vsub.s32 %v702, %v704
  %v706 = vrot.slane %v692, %v705
  %v707 = vcombine.low %v699, %v706
  %v708 = vcombine.low %v646, %v650
  %v709 = vcombine.low %v654, %v658
  %v711 = vunpack.c.l.s4 1983009808
  %v712 = vunpack.c.0.s8 %v711
  %v713 = vlaneseq
  %v714 = vshrl.u32 %v713, 7
  %v715 = vsub.s32 %v712, %v714
  %v716 = vrot.slane %v708, %v715
  %v718 = vunpack.c.l.s4 1983009808
  %v719 = vunpack.c.0.s8 %v718
  %v720 = vlaneseq
  %v721 = vshrl.u32 %v720, 7
  %v722 = vsub.s32 %v719, %v721
  %v723 = vrot.slane %v709, %v722
  %v724 = vcombine.low %v716, %v723
  %v725 = vcombine.low %v662, %v666
  %v726 = vcombine.low %v670, %v674
  %v728 = vunpack.c.l.s4 1983009808
  %v729 = vunpack.c.0.s8 %v728
  %v730 = vlaneseq
  %v731 = vshrl.u32 %v730, 7
  %v732 = vsub.s32 %v729, %v731
  %v733 = vrot.slane %v725, %v732
  %v735 = vunpack.c.l.s4 1983009808
  %v736 = vunpack.c.0.s8 %v735
  %v737 = vlaneseq
  %v738 = vshrl.u32 %v737, 7
  %v739 = vsub.s32 %v736, %v738
  %v740 = vrot.slane %v726, %v739
  %v741 = vcombine.low %v733, %v740
  %v742 = vcombine.low %v678, %v682
  %v743 = vcombine.low %v686, %v690
  %v745 = vunpack.c.l.s4 1983009808
  %v746 = vunpack.c.0.s8 %v745
  %v747 = vlaneseq
  %v748 = vshrl.u32 %v747, 7
  %v749 = vsub.s32 %v746, %v748
  %v750 = vrot.slane %v742, %v749
  %v752 = vunpack.c.l.s4 1983009808
  %v753 = vunpack.c.0.s8 %v752
  %v754 = vlaneseq
  %v755 = vshrl.u32 %v754, 7
  %v756 = vsub.s32 %v753, %v755
  %v757 = vrot.slane %v743, %v756
  %v758 = vcombine.low %v750, %v757
  %v763 = vmul.f32 %v619, %v707
  %v764 = vmul.f32 %v620, %v724
  %v765 = vmul.f32 %v621, %v741
  %v766 = vmul.f32 %v622, %v758
  %v767 = vadd.f32 %v615, %v763
  %v768 = vadd.f32 %v616, %v764
  %v769 = vadd.f32 %v617, %v765
  %v770 = vadd.f32 %v618, %v766
  %v771 = vld [vmem:[%s0 + $0xa0] sm:$0xff]
  %v772 = vld [vmem:[%s0 + $0xa8] sm:$0xff]
  %v773 = vld [vmem:[%s0 + $0xb0] sm:$0xff]
  %v774 = vld [vmem:[%s0 + $0xb8] sm:$0xff]
  %v775 = vld [vmem:[%s1 + $0x50] sm:$0xff]
  %v776 = vld [vmem:[%s1 + $0x58] sm:$0xff]
  %v779 = vlaneseq
  %v780 = vshrl.u32 %v779, 7
  %v781 = vsub.s32 0, %v780
  %v782 = vrot.slane %v775, %v781
  %v783 = vlaneseq
  %v784 = vshrl.u32 %v783, 7
  %v785 = vsub.s32 1, %v784
  %v786 = vrot.slane %v775, %v785
  %v787 = vlaneseq
  %v788 = vshrl.u32 %v787, 7
  %v789 = vsub.s32 2, %v788
  %v790 = vrot.slane %v775, %v789
  %v791 = vlaneseq
  %v792 = vshrl.u32 %v791, 7
  %v793 = vsub.s32 3, %v792
  %v794 = vrot.slane %v775, %v793
  %v795 = vlaneseq
  %v796 = vshrl.u32 %v795, 7
  %v797 = vsub.s32 4, %v796
  %v798 = vrot.slane %v775, %v797
  %v799 = vlaneseq
  %v800 = vshrl.u32 %v799, 7
  %v801 = vsub.s32 5, %v800
  %v802 = vrot.slane %v775, %v801
  %v803 = vlaneseq
  %v804 = vshrl.u32 %v803, 7
  %v805 = vsub.s32 6, %v804
  %v806 = vrot.slane %v775, %v805
  %v807 = vlaneseq
  %v808 = vshrl.u32 %v807, 7
  %v809 = vsub.s32 7, %v808
  %v810 = vrot.slane %v775, %v809
  %v811 = vlaneseq
  %v812 = vshrl.u32 %v811, 7
  %v813 = vsub.s32 0, %v812
  %v814 = vrot.slane %v776, %v813
  %v815 = vlaneseq
  %v816 = vshrl.u32 %v815, 7
  %v817 = vsub.s32 1, %v816
  %v818 = vrot.slane %v776, %v817
  %v819 = vlaneseq
  %v820 = vshrl.u32 %v819, 7
  %v821 = vsub.s32 2, %v820
  %v822 = vrot.slane %v776, %v821
  %v823 = vlaneseq
  %v824 = vshrl.u32 %v823, 7
  %v825 = vsub.s32 3, %v824
  %v826 = vrot.slane %v776, %v825
  %v827 = vlaneseq
  %v828 = vshrl.u32 %v827, 7
  %v829 = vsub.s32 4, %v828
  %v830 = vrot.slane %v776, %v829
  %v831 = vlaneseq
  %v832 = vshrl.u32 %v831, 7
  %v833 = vsub.s32 5, %v832
  %v834 = vrot.slane %v776, %v833
  %v835 = vlaneseq
  %v836 = vshrl.u32 %v835, 7
  %v837 = vsub.s32 6, %v836
  %v838 = vrot.slane %v776, %v837
  %v839 = vlaneseq
  %v840 = vshrl.u32 %v839, 7
  %v841 = vsub.s32 7, %v840
  %v842 = vrot.slane %v776, %v841
  %v843 = vcombine.low %v782, %v786
  %v844 = vcombine.low %v790, %v794
  %v846 = vunpack.c.l.s4 1983009808
  %v847 = vunpack.c.0.s8 %v846
  %v848 = vlaneseq
  %v849 = vshrl.u32 %v848, 7
  %v850 = vsub.s32 %v847, %v849
  %v851 = vrot.slane %v843, %v850
  %v853 = vunpack.c.l.s4 1983009808
  %v854 = vunpack.c.0.s8 %v853
  %v855 = vlaneseq
  %v856 = vshrl.u32 %v855, 7
  %v857 = vsub.s32 %v854, %v856
  %v858 = vrot.slane %v844, %v857
  %v859 = vcombine.low %v851, %v858
  %v860 = vcombine.low %v798, %v802
  %v861 = vcombine.low %v806, %v810
  %v863 = vunpack.c.l.s4 1983009808
  %v864 = vunpack.c.0.s8 %v863
  %v865 = vlaneseq
  %v866 = vshrl.u32 %v865, 7
  %v867 = vsub.s32 %v864, %v866
  %v868 = vrot.slane %v860, %v867
  %v870 = vunpack.c.l.s4 1983009808
  %v871 = vunpack.c.0.s8 %v870
  %v872 = vlaneseq
  %v873 = vshrl.u32 %v872, 7
  %v874 = vsub.s32 %v871, %v873
  %v875 = vrot.slane %v861, %v874
  %v876 = vcombine.low %v868, %v875
  %v877 = vcombine.low %v814, %v818
  %v878 = vcombine.low %v822, %v826
  %v880 = vunpack.c.l.s4 1983009808
  %v881 = vunpack.c.0.s8 %v880
  %v882 = vlaneseq
  %v883 = vshrl.u32 %v882, 7
  %v884 = vsub.s32 %v881, %v883
  %v885 = vrot.slane %v877, %v884
  %v887 = vunpack.c.l.s4 1983009808
  %v888 = vunpack.c.0.s8 %v887
  %v889 = vlaneseq
  %v890 = vshrl.u32 %v889, 7
  %v891 = vsub.s32 %v888, %v890
  %v892 = vrot.slane %v878, %v891
  %v893 = vcombine.low %v885, %v892
  %v894 = vcombine.low %v830, %v834
  %v895 = vcombine.low %v838, %v842
  %v897 = vunpack.c.l.s4 1983009808
  %v898 = vunpack.c.0.s8 %v897
  %v899 = vlaneseq
  %v900 = vshrl.u32 %v899, 7
  %v901 = vsub.s32 %v898, %v900
  %v902 = vrot.slane %v894, %v901
  %v904 = vunpack.c.l.s4 1983009808
  %v905 = vunpack.c.0.s8 %v904
  %v906 = vlaneseq
  %v907 = vshrl.u32 %v906, 7
  %v908 = vsub.s32 %v905, %v907
  %v909 = vrot.slane %v895, %v908
  %v910 = vcombine.low %v902, %v909
  %v915 = vmul.f32 %v771, %v859
  %v916 = vmul.f32 %v772, %v876
  %v917 = vmul.f32 %v773, %v893
  %v918 = vmul.f32 %v774, %v910
  %v919 = vadd.f32 %v767, %v915
  %v920 = vadd.f32 %v768, %v916
  %v921 = vadd.f32 %v769, %v917
  %v922 = vadd.f32 %v770, %v918
  %v923 = vld [vmem:[%s0 + $0xc0] sm:$0xff]
  %v924 = vld [vmem:[%s0 + $0xc8] sm:$0xff]
  %v925 = vld [vmem:[%s0 + $0xd0] sm:$0xff]
  %v926 = vld [vmem:[%s0 + $0xd8] sm:$0xff]
  %v927 = vld [vmem:[%s1 + $0x60] sm:$0xff]
  %v928 = vld [vmem:[%s1 + $0x68] sm:$0xff]
  %v931 = vlaneseq
  %v932 = vshrl.u32 %v931, 7
  %v933 = vsub.s32 0, %v932
  %v934 = vrot.slane %v927, %v933
  %v935 = vlaneseq
  %v936 = vshrl.u32 %v935, 7
  %v937 = vsub.s32 1, %v936
  %v938 = vrot.slane %v927, %v937
  %v939 = vlaneseq
  %v940 = vshrl.u32 %v939, 7
  %v941 = vsub.s32 2, %v940
  %v942 = vrot.slane %v927, %v941
  %v943 = vlaneseq
  %v944 = vshrl.u32 %v943, 7
  %v945 = vsub.s32 3, %v944
  %v946 = vrot.slane %v927, %v945
  %v947 = vlaneseq
  %v948 = vshrl.u32 %v947, 7
  %v949 = vsub.s32 4, %v948
  %v950 = vrot.slane %v927, %v949
  %v951 = vlaneseq
  %v952 = vshrl.u32 %v951, 7
  %v953 = vsub.s32 5, %v952
  %v954 = vrot.slane %v927, %v953
  %v955 = vlaneseq
  %v956 = vshrl.u32 %v955, 7
  %v957 = vsub.s32 6, %v956
  %v958 = vrot.slane %v927, %v957
  %v959 = vlaneseq
  %v960 = vshrl.u32 %v959, 7
  %v961 = vsub.s32 7, %v960
  %v962 = vrot.slane %v927, %v961
  %v963 = vlaneseq
  %v964 = vshrl.u32 %v963, 7
  %v965 = vsub.s32 0, %v964
  %v966 = vrot.slane %v928, %v965
  %v967 = vlaneseq
  %v968 = vshrl.u32 %v967, 7
  %v969 = vsub.s32 1, %v968
  %v970 = vrot.slane %v928, %v969
  %v971 = vlaneseq
  %v972 = vshrl.u32 %v971, 7
  %v973 = vsub.s32 2, %v972
  %v974 = vrot.slane %v928, %v973
  %v975 = vlaneseq
  %v976 = vshrl.u32 %v975, 7
  %v977 = vsub.s32 3, %v976
  %v978 = vrot.slane %v928, %v977
  %v979 = vlaneseq
  %v980 = vshrl.u32 %v979, 7
  %v981 = vsub.s32 4, %v980
  %v982 = vrot.slane %v928, %v981
  %v983 = vlaneseq
  %v984 = vshrl.u32 %v983, 7
  %v985 = vsub.s32 5, %v984
  %v986 = vrot.slane %v928, %v985
  %v987 = vlaneseq
  %v988 = vshrl.u32 %v987, 7
  %v989 = vsub.s32 6, %v988
  %v990 = vrot.slane %v928, %v989
  %v991 = vlaneseq
  %v992 = vshrl.u32 %v991, 7
  %v993 = vsub.s32 7, %v992
  %v994 = vrot.slane %v928, %v993
  %v995 = vcombine.low %v934, %v938
  %v996 = vcombine.low %v942, %v946
  %v998 = vunpack.c.l.s4 1983009808
  %v999 = vunpack.c.0.s8 %v998
  %v1000 = vlaneseq
  %v1001 = vshrl.u32 %v1000, 7
  %v1002 = vsub.s32 %v999, %v1001
  %v1003 = vrot.slane %v995, %v1002
  %v1005 = vunpack.c.l.s4 1983009808
  %v1006 = vunpack.c.0.s8 %v1005
  %v1007 = vlaneseq
  %v1008 = vshrl.u32 %v1007, 7
  %v1009 = vsub.s32 %v1006, %v1008
  %v1010 = vrot.slane %v996, %v1009
  %v1011 = vcombine.low %v1003, %v1010
  %v1012 = vcombine.low %v950, %v954
  %v1013 = vcombine.low %v958, %v962
  %v1015 = vunpack.c.l.s4 1983009808
  %v1016 = vunpack.c.0.s8 %v1015
  %v1017 = vlaneseq
  %v1018 = vshrl.u32 %v1017, 7
  %v1019 = vsub.s32 %v1016, %v1018
  %v1020 = vrot.slane %v1012, %v1019
  %v1022 = vunpack.c.l.s4 1983009808
  %v1023 = vunpack.c.0.s8 %v1022
  %v1024 = vlaneseq
  %v1025 = vshrl.u32 %v1024, 7
  %v1026 = vsub.s32 %v1023, %v1025
  %v1027 = vrot.slane %v1013, %v1026
  %v1028 = vcombine.low %v1020, %v1027
  %v1029 = vcombine.low %v966, %v970
  %v1030 = vcombine.low %v974, %v978
  %v1032 = vunpack.c.l.s4 1983009808
  %v1033 = vunpack.c.0.s8 %v1032
  %v1034 = vlaneseq
  %v1035 = vshrl.u32 %v1034, 7
  %v1036 = vsub.s32 %v1033, %v1035
  %v1037 = vrot.slane %v1029, %v1036
  %v1039 = vunpack.c.l.s4 1983009808
  %v1040 = vunpack.c.0.s8 %v1039
  %v1041 = vlaneseq
  %v1042 = vshrl.u32 %v1041, 7
  %v1043 = vsub.s32 %v1040, %v1042
  %v1044 = vrot.slane %v1030, %v1043
  %v1045 = vcombine.low %v1037, %v1044
  %v1046 = vcombine.low %v982, %v986
  %v1047 = vcombine.low %v990, %v994
  %v1049 = vunpack.c.l.s4 1983009808
  %v1050 = vunpack.c.0.s8 %v1049
  %v1051 = vlaneseq
  %v1052 = vshrl.u32 %v1051, 7
  %v1053 = vsub.s32 %v1050, %v1052
  %v1054 = vrot.slane %v1046, %v1053
  %v1056 = vunpack.c.l.s4 1983009808
  %v1057 = vunpack.c.0.s8 %v1056
  %v1058 = vlaneseq
  %v1059 = vshrl.u32 %v1058, 7
  %v1060 = vsub.s32 %v1057, %v1059
  %v1061 = vrot.slane %v1047, %v1060
  %v1062 = vcombine.low %v1054, %v1061
  %v1067 = vmul.f32 %v923, %v1011
  %v1068 = vmul.f32 %v924, %v1028
  %v1069 = vmul.f32 %v925, %v1045
  %v1070 = vmul.f32 %v926, %v1062
  %v1071 = vadd.f32 %v919, %v1067
  %v1072 = vadd.f32 %v920, %v1068
  %v1073 = vadd.f32 %v921, %v1069
  %v1074 = vadd.f32 %v922, %v1070
  %v1075 = vld [vmem:[%s0 + $0xe0] sm:$0xff]
  %v1076 = vld [vmem:[%s0 + $0xe8] sm:$0xff]
  %v1077 = vld [vmem:[%s0 + $0xf0] sm:$0xff]
  %v1078 = vld [vmem:[%s0 + $0xf8] sm:$0xff]
  %v1079 = vld [vmem:[%s1 + $0x70] sm:$0xff]
  %v1080 = vld [vmem:[%s1 + $0x78] sm:$0xff]
  %v1083 = vlaneseq
  %v1084 = vshrl.u32 %v1083, 7
  %v1085 = vsub.s32 0, %v1084
  %v1086 = vrot.slane %v1079, %v1085
  %v1087 = vlaneseq
  %v1088 = vshrl.u32 %v1087, 7
  %v1089 = vsub.s32 1, %v1088
  %v1090 = vrot.slane %v1079, %v1089
  %v1091 = vlaneseq
  %v1092 = vshrl.u32 %v1091, 7
  %v1093 = vsub.s32 2, %v1092
  %v1094 = vrot.slane %v1079, %v1093
  %v1095 = vlaneseq
  %v1096 = vshrl.u32 %v1095, 7
  %v1097 = vsub.s32 3, %v1096
  %v1098 = vrot.slane %v1079, %v1097
  %v1099 = vlaneseq
  %v1100 = vshrl.u32 %v1099, 7
  %v1101 = vsub.s32 4, %v1100
  %v1102 = vrot.slane %v1079, %v1101
  %v1103 = vlaneseq
  %v1104 = vshrl.u32 %v1103, 7
  %v1105 = vsub.s32 5, %v1104
  %v1106 = vrot.slane %v1079, %v1105
  %v1107 = vlaneseq
  %v1108 = vshrl.u32 %v1107, 7
  %v1109 = vsub.s32 6, %v1108
  %v1110 = vrot.slane %v1079, %v1109
  %v1111 = vlaneseq
  %v1112 = vshrl.u32 %v1111, 7
  %v1113 = vsub.s32 7, %v1112
  %v1114 = vrot.slane %v1079, %v1113
  %v1115 = vlaneseq
  %v1116 = vshrl.u32 %v1115, 7
  %v1117 = vsub.s32 0, %v1116
  %v1118 = vrot.slane %v1080, %v1117
  %v1119 = vlaneseq
  %v1120 = vshrl.u32 %v1119, 7
  %v1121 = vsub.s32 1, %v1120
  %v1122 = vrot.slane %v1080, %v1121
  %v1123 = vlaneseq
  %v1124 = vshrl.u32 %v1123, 7
  %v1125 = vsub.s32 2, %v1124
  %v1126 = vrot.slane %v1080, %v1125
  %v1127 = vlaneseq
  %v1128 = vshrl.u32 %v1127, 7
  %v1129 = vsub.s32 3, %v1128
  %v1130 = vrot.slane %v1080, %v1129
  %v1131 = vlaneseq
  %v1132 = vshrl.u32 %v1131, 7
  %v1133 = vsub.s32 4, %v1132
  %v1134 = vrot.slane %v1080, %v1133
  %v1135 = vlaneseq
  %v1136 = vshrl.u32 %v1135, 7
  %v1137 = vsub.s32 5, %v1136
  %v1138 = vrot.slane %v1080, %v1137
  %v1139 = vlaneseq
  %v1140 = vshrl.u32 %v1139, 7
  %v1141 = vsub.s32 6, %v1140
  %v1142 = vrot.slane %v1080, %v1141
  %v1143 = vlaneseq
  %v1144 = vshrl.u32 %v1143, 7
  %v1145 = vsub.s32 7, %v1144
  %v1146 = vrot.slane %v1080, %v1145
  %v1147 = vcombine.low %v1086, %v1090
  %v1148 = vcombine.low %v1094, %v1098
  %v1150 = vunpack.c.l.s4 1983009808
  %v1151 = vunpack.c.0.s8 %v1150
  %v1152 = vlaneseq
  %v1153 = vshrl.u32 %v1152, 7
  %v1154 = vsub.s32 %v1151, %v1153
  %v1155 = vrot.slane %v1147, %v1154
  %v1157 = vunpack.c.l.s4 1983009808
  %v1158 = vunpack.c.0.s8 %v1157
  %v1159 = vlaneseq
  %v1160 = vshrl.u32 %v1159, 7
  %v1161 = vsub.s32 %v1158, %v1160
  %v1162 = vrot.slane %v1148, %v1161
  %v1163 = vcombine.low %v1155, %v1162
  %v1164 = vcombine.low %v1102, %v1106
  %v1165 = vcombine.low %v1110, %v1114
  %v1167 = vunpack.c.l.s4 1983009808
  %v1168 = vunpack.c.0.s8 %v1167
  %v1169 = vlaneseq
  %v1170 = vshrl.u32 %v1169, 7
  %v1171 = vsub.s32 %v1168, %v1170
  %v1172 = vrot.slane %v1164, %v1171
  %v1174 = vunpack.c.l.s4 1983009808
  %v1175 = vunpack.c.0.s8 %v1174
  %v1176 = vlaneseq
  %v1177 = vshrl.u32 %v1176, 7
  %v1178 = vsub.s32 %v1175, %v1177
  %v1179 = vrot.slane %v1165, %v1178
  %v1180 = vcombine.low %v1172, %v1179
  %v1181 = vcombine.low %v1118, %v1122
  %v1182 = vcombine.low %v1126, %v1130
  %v1184 = vunpack.c.l.s4 1983009808
  %v1185 = vunpack.c.0.s8 %v1184
  %v1186 = vlaneseq
  %v1187 = vshrl.u32 %v1186, 7
  %v1188 = vsub.s32 %v1185, %v1187
  %v1189 = vrot.slane %v1181, %v1188
  %v1191 = vunpack.c.l.s4 1983009808
  %v1192 = vunpack.c.0.s8 %v1191
  %v1193 = vlaneseq
  %v1194 = vshrl.u32 %v1193, 7
  %v1195 = vsub.s32 %v1192, %v1194
  %v1196 = vrot.slane %v1182, %v1195
  %v1197 = vcombine.low %v1189, %v1196
  %v1198 = vcombine.low %v1134, %v1138
  %v1199 = vcombine.low %v1142, %v1146
  %v1201 = vunpack.c.l.s4 1983009808
  %v1202 = vunpack.c.0.s8 %v1201
  %v1203 = vlaneseq
  %v1204 = vshrl.u32 %v1203, 7
  %v1205 = vsub.s32 %v1202, %v1204
  %v1206 = vrot.slane %v1198, %v1205
  %v1208 = vunpack.c.l.s4 1983009808
  %v1209 = vunpack.c.0.s8 %v1208
  %v1210 = vlaneseq
  %v1211 = vshrl.u32 %v1210, 7
  %v1212 = vsub.s32 %v1209, %v1211
  %v1213 = vrot.slane %v1199, %v1212
  %v1214 = vcombine.low %v1206, %v1213
  %v1219 = vmul.f32 %v1075, %v1163
  %v1220 = vmul.f32 %v1076, %v1180
  %v1221 = vmul.f32 %v1077, %v1197
  %v1222 = vmul.f32 %v1078, %v1214
  %v1223 = vadd.f32 %v1071, %v1219
  %v1224 = vadd.f32 %v1072, %v1220
  %v1225 = vadd.f32 %v1073, %v1221
  %v1226 = vadd.f32 %v1074, %v1222
  %v1227 = vld [vmem:[%s0 + $0x100] sm:$0xff]
  %v1228 = vld [vmem:[%s0 + $0x108] sm:$0xff]
  %v1229 = vld [vmem:[%s0 + $0x110] sm:$0xff]
  %v1230 = vld [vmem:[%s0 + $0x118] sm:$0xff]
  %v1231 = vld [vmem:[%s1 + $0x80] sm:$0xff]
  %v1232 = vld [vmem:[%s1 + $0x88] sm:$0xff]
  %v1235 = vlaneseq
  %v1236 = vshrl.u32 %v1235, 7
  %v1237 = vsub.s32 0, %v1236
  %v1238 = vrot.slane %v1231, %v1237
  %v1239 = vlaneseq
  %v1240 = vshrl.u32 %v1239, 7
  %v1241 = vsub.s32 1, %v1240
  %v1242 = vrot.slane %v1231, %v1241
  %v1243 = vlaneseq
  %v1244 = vshrl.u32 %v1243, 7
  %v1245 = vsub.s32 2, %v1244
  %v1246 = vrot.slane %v1231, %v1245
  %v1247 = vlaneseq
  %v1248 = vshrl.u32 %v1247, 7
  %v1249 = vsub.s32 3, %v1248
  %v1250 = vrot.slane %v1231, %v1249
  %v1251 = vlaneseq
  %v1252 = vshrl.u32 %v1251, 7
  %v1253 = vsub.s32 4, %v1252
  %v1254 = vrot.slane %v1231, %v1253
  %v1255 = vlaneseq
  %v1256 = vshrl.u32 %v1255, 7
  %v1257 = vsub.s32 5, %v1256
  %v1258 = vrot.slane %v1231, %v1257
  %v1259 = vlaneseq
  %v1260 = vshrl.u32 %v1259, 7
  %v1261 = vsub.s32 6, %v1260
  %v1262 = vrot.slane %v1231, %v1261
  %v1263 = vlaneseq
  %v1264 = vshrl.u32 %v1263, 7
  %v1265 = vsub.s32 7, %v1264
  %v1266 = vrot.slane %v1231, %v1265
  %v1267 = vlaneseq
  %v1268 = vshrl.u32 %v1267, 7
  %v1269 = vsub.s32 0, %v1268
  %v1270 = vrot.slane %v1232, %v1269
  %v1271 = vlaneseq
  %v1272 = vshrl.u32 %v1271, 7
  %v1273 = vsub.s32 1, %v1272
  %v1274 = vrot.slane %v1232, %v1273
  %v1275 = vlaneseq
  %v1276 = vshrl.u32 %v1275, 7
  %v1277 = vsub.s32 2, %v1276
  %v1278 = vrot.slane %v1232, %v1277
  %v1279 = vlaneseq
  %v1280 = vshrl.u32 %v1279, 7
  %v1281 = vsub.s32 3, %v1280
  %v1282 = vrot.slane %v1232, %v1281
  %v1283 = vlaneseq
  %v1284 = vshrl.u32 %v1283, 7
  %v1285 = vsub.s32 4, %v1284
  %v1286 = vrot.slane %v1232, %v1285
  %v1287 = vlaneseq
  %v1288 = vshrl.u32 %v1287, 7
  %v1289 = vsub.s32 5, %v1288
  %v1290 = vrot.slane %v1232, %v1289
  %v1291 = vlaneseq
  %v1292 = vshrl.u32 %v1291, 7
  %v1293 = vsub.s32 6, %v1292
  %v1294 = vrot.slane %v1232, %v1293
  %v1295 = vlaneseq
  %v1296 = vshrl.u32 %v1295, 7
  %v1297 = vsub.s32 7, %v1296
  %v1298 = vrot.slane %v1232, %v1297
  %v1299 = vcombine.low %v1238, %v1242
  %v1300 = vcombine.low %v1246, %v1250
  %v1302 = vunpack.c.l.s4 1983009808
  %v1303 = vunpack.c.0.s8 %v1302
  %v1304 = vlaneseq
  %v1305 = vshrl.u32 %v1304, 7
  %v1306 = vsub.s32 %v1303, %v1305
  %v1307 = vrot.slane %v1299, %v1306
  %v1309 = vunpack.c.l.s4 1983009808
  %v1310 = vunpack.c.0.s8 %v1309
  %v1311 = vlaneseq
  %v1312 = vshrl.u32 %v1311, 7
  %v1313 = vsub.s32 %v1310, %v1312
  %v1314 = vrot.slane %v1300, %v1313
  %v1315 = vcombine.low %v1307, %v1314
  %v1316 = vcombine.low %v1254, %v1258
  %v1317 = vcombine.low %v1262, %v1266
  %v1319 = vunpack.c.l.s4 1983009808
  %v1320 = vunpack.c.0.s8 %v1319
  %v1321 = vlaneseq
  %v1322 = vshrl.u32 %v1321, 7
  %v1323 = vsub.s32 %v1320, %v1322
  %v1324 = vrot.slane %v1316, %v1323
  %v1326 = vunpack.c.l.s4 1983009808
  %v1327 = vunpack.c.0.s8 %v1326
  %v1328 = vlaneseq
  %v1329 = vshrl.u32 %v1328, 7
  %v1330 = vsub.s32 %v1327, %v1329
  %v1331 = vrot.slane %v1317, %v1330
  %v1332 = vcombine.low %v1324, %v1331
  %v1333 = vcombine.low %v1270, %v1274
  %v1334 = vcombine.low %v1278, %v1282
  %v1336 = vunpack.c.l.s4 1983009808
  %v1337 = vunpack.c.0.s8 %v1336
  %v1338 = vlaneseq
  %v1339 = vshrl.u32 %v1338, 7
  %v1340 = vsub.s32 %v1337, %v1339
  %v1341 = vrot.slane %v1333, %v1340
  %v1343 = vunpack.c.l.s4 1983009808
  %v1344 = vunpack.c.0.s8 %v1343
  %v1345 = vlaneseq
  %v1346 = vshrl.u32 %v1345, 7
  %v1347 = vsub.s32 %v1344, %v1346
  %v1348 = vrot.slane %v1334, %v1347
  %v1349 = vcombine.low %v1341, %v1348
  %v1350 = vcombine.low %v1286, %v1290
  %v1351 = vcombine.low %v1294, %v1298
  %v1353 = vunpack.c.l.s4 1983009808
  %v1354 = vunpack.c.0.s8 %v1353
  %v1355 = vlaneseq
  %v1356 = vshrl.u32 %v1355, 7
  %v1357 = vsub.s32 %v1354, %v1356
  %v1358 = vrot.slane %v1350, %v1357
  %v1360 = vunpack.c.l.s4 1983009808
  %v1361 = vunpack.c.0.s8 %v1360
  %v1362 = vlaneseq
  %v1363 = vshrl.u32 %v1362, 7
  %v1364 = vsub.s32 %v1361, %v1363
  %v1365 = vrot.slane %v1351, %v1364
  %v1366 = vcombine.low %v1358, %v1365
  %v1371 = vmul.f32 %v1227, %v1315
  %v1372 = vmul.f32 %v1228, %v1332
  %v1373 = vmul.f32 %v1229, %v1349
  %v1374 = vmul.f32 %v1230, %v1366
  %v1375 = vadd.f32 %v1223, %v1371
  %v1376 = vadd.f32 %v1224, %v1372
  %v1377 = vadd.f32 %v1225, %v1373
  %v1378 = vadd.f32 %v1226, %v1374
  %v1379 = vld [vmem:[%s0 + $0x120] sm:$0xff]
  %v1380 = vld [vmem:[%s0 + $0x128] sm:$0xff]
  %v1381 = vld [vmem:[%s0 + $0x130] sm:$0xff]
  %v1382 = vld [vmem:[%s0 + $0x138] sm:$0xff]
  %v1383 = vld [vmem:[%s1 + $0x90] sm:$0xff]
  %v1384 = vld [vmem:[%s1 + $0x98] sm:$0xff]
  %v1387 = vlaneseq
  %v1388 = vshrl.u32 %v1387, 7
  %v1389 = vsub.s32 0, %v1388
  %v1390 = vrot.slane %v1383, %v1389
  %v1391 = vlaneseq
  %v1392 = vshrl.u32 %v1391, 7
  %v1393 = vsub.s32 1, %v1392
  %v1394 = vrot.slane %v1383, %v1393
  %v1395 = vlaneseq
  %v1396 = vshrl.u32 %v1395, 7
  %v1397 = vsub.s32 2, %v1396
  %v1398 = vrot.slane %v1383, %v1397
  %v1399 = vlaneseq
  %v1400 = vshrl.u32 %v1399, 7
  %v1401 = vsub.s32 3, %v1400
  %v1402 = vrot.slane %v1383, %v1401
  %v1403 = vlaneseq
  %v1404 = vshrl.u32 %v1403, 7
  %v1405 = vsub.s32 4, %v1404
  %v1406 = vrot.slane %v1383, %v1405
  %v1407 = vlaneseq
  %v1408 = vshrl.u32 %v1407, 7
  %v1409 = vsub.s32 5, %v1408
  %v1410 = vrot.slane %v1383, %v1409
  %v1411 = vlaneseq
  %v1412 = vshrl.u32 %v1411, 7
  %v1413 = vsub.s32 6, %v1412
  %v1414 = vrot.slane %v1383, %v1413
  %v1415 = vlaneseq
  %v1416 = vshrl.u32 %v1415, 7
  %v1417 = vsub.s32 7, %v1416
  %v1418 = vrot.slane %v1383, %v1417
  %v1419 = vlaneseq
  %v1420 = vshrl.u32 %v1419, 7
  %v1421 = vsub.s32 0, %v1420
  %v1422 = vrot.slane %v1384, %v1421
  %v1423 = vlaneseq
  %v1424 = vshrl.u32 %v1423, 7
  %v1425 = vsub.s32 1, %v1424
  %v1426 = vrot.slane %v1384, %v1425
  %v1427 = vlaneseq
  %v1428 = vshrl.u32 %v1427, 7
  %v1429 = vsub.s32 2, %v1428
  %v1430 = vrot.slane %v1384, %v1429
  %v1431 = vlaneseq
  %v1432 = vshrl.u32 %v1431, 7
  %v1433 = vsub.s32 3, %v1432
  %v1434 = vrot.slane %v1384, %v1433
  %v1435 = vlaneseq
  %v1436 = vshrl.u32 %v1435, 7
  %v1437 = vsub.s32 4, %v1436
  %v1438 = vrot.slane %v1384, %v1437
  %v1439 = vlaneseq
  %v1440 = vshrl.u32 %v1439, 7
  %v1441 = vsub.s32 5, %v1440
  %v1442 = vrot.slane %v1384, %v1441
  %v1443 = vlaneseq
  %v1444 = vshrl.u32 %v1443, 7
  %v1445 = vsub.s32 6, %v1444
  %v1446 = vrot.slane %v1384, %v1445
  %v1447 = vlaneseq
  %v1448 = vshrl.u32 %v1447, 7
  %v1449 = vsub.s32 7, %v1448
  %v1450 = vrot.slane %v1384, %v1449
  %v1451 = vcombine.low %v1390, %v1394
  %v1452 = vcombine.low %v1398, %v1402
  %v1454 = vunpack.c.l.s4 1983009808
  %v1455 = vunpack.c.0.s8 %v1454
  %v1456 = vlaneseq
  %v1457 = vshrl.u32 %v1456, 7
  %v1458 = vsub.s32 %v1455, %v1457
  %v1459 = vrot.slane %v1451, %v1458
  %v1461 = vunpack.c.l.s4 1983009808
  %v1462 = vunpack.c.0.s8 %v1461
  %v1463 = vlaneseq
  %v1464 = vshrl.u32 %v1463, 7
  %v1465 = vsub.s32 %v1462, %v1464
  %v1466 = vrot.slane %v1452, %v1465
  %v1467 = vcombine.low %v1459, %v1466
  %v1468 = vcombine.low %v1406, %v1410
  %v1469 = vcombine.low %v1414, %v1418
  %v1471 = vunpack.c.l.s4 1983009808
  %v1472 = vunpack.c.0.s8 %v1471
  %v1473 = vlaneseq
  %v1474 = vshrl.u32 %v1473, 7
  %v1475 = vsub.s32 %v1472, %v1474
  %v1476 = vrot.slane %v1468, %v1475
  %v1478 = vunpack.c.l.s4 1983009808
  %v1479 = vunpack.c.0.s8 %v1478
  %v1480 = vlaneseq
  %v1481 = vshrl.u32 %v1480, 7
  %v1482 = vsub.s32 %v1479, %v1481
  %v1483 = vrot.slane %v1469, %v1482
  %v1484 = vcombine.low %v1476, %v1483
  %v1485 = vcombine.low %v1422, %v1426
  %v1486 = vcombine.low %v1430, %v1434
  %v1488 = vunpack.c.l.s4 1983009808
  %v1489 = vunpack.c.0.s8 %v1488
  %v1490 = vlaneseq
  %v1491 = vshrl.u32 %v1490, 7
  %v1492 = vsub.s32 %v1489, %v1491
  %v1493 = vrot.slane %v1485, %v1492
  %v1495 = vunpack.c.l.s4 1983009808
  %v1496 = vunpack.c.0.s8 %v1495
  %v1497 = vlaneseq
  %v1498 = vshrl.u32 %v1497, 7
  %v1499 = vsub.s32 %v1496, %v1498
  %v1500 = vrot.slane %v1486, %v1499
  %v1501 = vcombine.low %v1493, %v1500
  %v1502 = vcombine.low %v1438, %v1442
  %v1503 = vcombine.low %v1446, %v1450
  %v1505 = vunpack.c.l.s4 1983009808
  %v1506 = vunpack.c.0.s8 %v1505
  %v1507 = vlaneseq
  %v1508 = vshrl.u32 %v1507, 7
  %v1509 = vsub.s32 %v1506, %v1508
  %v1510 = vrot.slane %v1502, %v1509
  %v1512 = vunpack.c.l.s4 1983009808
  %v1513 = vunpack.c.0.s8 %v1512
  %v1514 = vlaneseq
  %v1515 = vshrl.u32 %v1514, 7
  %v1516 = vsub.s32 %v1513, %v1515
  %v1517 = vrot.slane %v1503, %v1516
  %v1518 = vcombine.low %v1510, %v1517
  %v1523 = vmul.f32 %v1379, %v1467
  %v1524 = vmul.f32 %v1380, %v1484
  %v1525 = vmul.f32 %v1381, %v1501
  %v1526 = vmul.f32 %v1382, %v1518
  %v1527 = vadd.f32 %v1375, %v1523
  %v1528 = vadd.f32 %v1376, %v1524
  %v1529 = vadd.f32 %v1377, %v1525
  %v1530 = vadd.f32 %v1378, %v1526
  %v1531 = vld [vmem:[%s0 + $0x140] sm:$0xff]
  %v1532 = vld [vmem:[%s0 + $0x148] sm:$0xff]
  %v1533 = vld [vmem:[%s0 + $0x150] sm:$0xff]
  %v1534 = vld [vmem:[%s0 + $0x158] sm:$0xff]
  %v1535 = vld [vmem:[%s1 + $0xa0] sm:$0xff]
  %v1536 = vld [vmem:[%s1 + $0xa8] sm:$0xff]
  %v1539 = vlaneseq
  %v1540 = vshrl.u32 %v1539, 7
  %v1541 = vsub.s32 0, %v1540
  %v1542 = vrot.slane %v1535, %v1541
  %v1543 = vlaneseq
  %v1544 = vshrl.u32 %v1543, 7
  %v1545 = vsub.s32 1, %v1544
  %v1546 = vrot.slane %v1535, %v1545
  %v1547 = vlaneseq
  %v1548 = vshrl.u32 %v1547, 7
  %v1549 = vsub.s32 2, %v1548
  %v1550 = vrot.slane %v1535, %v1549
  %v1551 = vlaneseq
  %v1552 = vshrl.u32 %v1551, 7
  %v1553 = vsub.s32 3, %v1552
  %v1554 = vrot.slane %v1535, %v1553
  %v1555 = vlaneseq
  %v1556 = vshrl.u32 %v1555, 7
  %v1557 = vsub.s32 4, %v1556
  %v1558 = vrot.slane %v1535, %v1557
  %v1559 = vlaneseq
  %v1560 = vshrl.u32 %v1559, 7
  %v1561 = vsub.s32 5, %v1560
  %v1562 = vrot.slane %v1535, %v1561
  %v1563 = vlaneseq
  %v1564 = vshrl.u32 %v1563, 7
  %v1565 = vsub.s32 6, %v1564
  %v1566 = vrot.slane %v1535, %v1565
  %v1567 = vlaneseq
  %v1568 = vshrl.u32 %v1567, 7
  %v1569 = vsub.s32 7, %v1568
  %v1570 = vrot.slane %v1535, %v1569
  %v1571 = vlaneseq
  %v1572 = vshrl.u32 %v1571, 7
  %v1573 = vsub.s32 0, %v1572
  %v1574 = vrot.slane %v1536, %v1573
  %v1575 = vlaneseq
  %v1576 = vshrl.u32 %v1575, 7
  %v1577 = vsub.s32 1, %v1576
  %v1578 = vrot.slane %v1536, %v1577
  %v1579 = vlaneseq
  %v1580 = vshrl.u32 %v1579, 7
  %v1581 = vsub.s32 2, %v1580
  %v1582 = vrot.slane %v1536, %v1581
  %v1583 = vlaneseq
  %v1584 = vshrl.u32 %v1583, 7
  %v1585 = vsub.s32 3, %v1584
  %v1586 = vrot.slane %v1536, %v1585
  %v1587 = vlaneseq
  %v1588 = vshrl.u32 %v1587, 7
  %v1589 = vsub.s32 4, %v1588
  %v1590 = vrot.slane %v1536, %v1589
  %v1591 = vlaneseq
  %v1592 = vshrl.u32 %v1591, 7
  %v1593 = vsub.s32 5, %v1592
  %v1594 = vrot.slane %v1536, %v1593
  %v1595 = vlaneseq
  %v1596 = vshrl.u32 %v1595, 7
  %v1597 = vsub.s32 6, %v1596
  %v1598 = vrot.slane %v1536, %v1597
  %v1599 = vlaneseq
  %v1600 = vshrl.u32 %v1599, 7
  %v1601 = vsub.s32 7, %v1600
  %v1602 = vrot.slane %v1536, %v1601
  %v1603 = vcombine.low %v1542, %v1546
  %v1604 = vcombine.low %v1550, %v1554
  %v1606 = vunpack.c.l.s4 1983009808
  %v1607 = vunpack.c.0.s8 %v1606
  %v1608 = vlaneseq
  %v1609 = vshrl.u32 %v1608, 7
  %v1610 = vsub.s32 %v1607, %v1609
  %v1611 = vrot.slane %v1603, %v1610
  %v1613 = vunpack.c.l.s4 1983009808
  %v1614 = vunpack.c.0.s8 %v1613
  %v1615 = vlaneseq
  %v1616 = vshrl.u32 %v1615, 7
  %v1617 = vsub.s32 %v1614, %v1616
  %v1618 = vrot.slane %v1604, %v1617
  %v1619 = vcombine.low %v1611, %v1618
  %v1620 = vcombine.low %v1558, %v1562
  %v1621 = vcombine.low %v1566, %v1570
  %v1623 = vunpack.c.l.s4 1983009808
  %v1624 = vunpack.c.0.s8 %v1623
  %v1625 = vlaneseq
  %v1626 = vshrl.u32 %v1625, 7
  %v1627 = vsub.s32 %v1624, %v1626
  %v1628 = vrot.slane %v1620, %v1627
  %v1630 = vunpack.c.l.s4 1983009808
  %v1631 = vunpack.c.0.s8 %v1630
  %v1632 = vlaneseq
  %v1633 = vshrl.u32 %v1632, 7
  %v1634 = vsub.s32 %v1631, %v1633
  %v1635 = vrot.slane %v1621, %v1634
  %v1636 = vcombine.low %v1628, %v1635
  %v1637 = vcombine.low %v1574, %v1578
  %v1638 = vcombine.low %v1582, %v1586
  %v1640 = vunpack.c.l.s4 1983009808
  %v1641 = vunpack.c.0.s8 %v1640
  %v1642 = vlaneseq
  %v1643 = vshrl.u32 %v1642, 7
  %v1644 = vsub.s32 %v1641, %v1643
  %v1645 = vrot.slane %v1637, %v1644
  %v1647 = vunpack.c.l.s4 1983009808
  %v1648 = vunpack.c.0.s8 %v1647
  %v1649 = vlaneseq
  %v1650 = vshrl.u32 %v1649, 7
  %v1651 = vsub.s32 %v1648, %v1650
  %v1652 = vrot.slane %v1638, %v1651
  %v1653 = vcombine.low %v1645, %v1652
  %v1654 = vcombine.low %v1590, %v1594
  %v1655 = vcombine.low %v1598, %v1602
  %v1657 = vunpack.c.l.s4 1983009808
  %v1658 = vunpack.c.0.s8 %v1657
  %v1659 = vlaneseq
  %v1660 = vshrl.u32 %v1659, 7
  %v1661 = vsub.s32 %v1658, %v1660
  %v1662 = vrot.slane %v1654, %v1661
  %v1664 = vunpack.c.l.s4 1983009808
  %v1665 = vunpack.c.0.s8 %v1664
  %v1666 = vlaneseq
  %v1667 = vshrl.u32 %v1666, 7
  %v1668 = vsub.s32 %v1665, %v1667
  %v1669 = vrot.slane %v1655, %v1668
  %v1670 = vcombine.low %v1662, %v1669
  %v1675 = vmul.f32 %v1531, %v1619
  %v1676 = vmul.f32 %v1532, %v1636
  %v1677 = vmul.f32 %v1533, %v1653
  %v1678 = vmul.f32 %v1534, %v1670
  %v1679 = vadd.f32 %v1527, %v1675
  %v1680 = vadd.f32 %v1528, %v1676
  %v1681 = vadd.f32 %v1529, %v1677
  %v1682 = vadd.f32 %v1530, %v1678
  %v1683 = vld [vmem:[%s0 + $0x160] sm:$0xff]
  %v1684 = vld [vmem:[%s0 + $0x168] sm:$0xff]
  %v1685 = vld [vmem:[%s0 + $0x170] sm:$0xff]
  %v1686 = vld [vmem:[%s0 + $0x178] sm:$0xff]
  %v1687 = vld [vmem:[%s1 + $0xb0] sm:$0xff]
  %v1688 = vld [vmem:[%s1 + $0xb8] sm:$0xff]
  %v1691 = vlaneseq
  %v1692 = vshrl.u32 %v1691, 7
  %v1693 = vsub.s32 0, %v1692
  %v1694 = vrot.slane %v1687, %v1693
  %v1695 = vlaneseq
  %v1696 = vshrl.u32 %v1695, 7
  %v1697 = vsub.s32 1, %v1696
  %v1698 = vrot.slane %v1687, %v1697
  %v1699 = vlaneseq
  %v1700 = vshrl.u32 %v1699, 7
  %v1701 = vsub.s32 2, %v1700
  %v1702 = vrot.slane %v1687, %v1701
  %v1703 = vlaneseq
  %v1704 = vshrl.u32 %v1703, 7
  %v1705 = vsub.s32 3, %v1704
  %v1706 = vrot.slane %v1687, %v1705
  %v1707 = vlaneseq
  %v1708 = vshrl.u32 %v1707, 7
  %v1709 = vsub.s32 4, %v1708
  %v1710 = vrot.slane %v1687, %v1709
  %v1711 = vlaneseq
  %v1712 = vshrl.u32 %v1711, 7
  %v1713 = vsub.s32 5, %v1712
  %v1714 = vrot.slane %v1687, %v1713
  %v1715 = vlaneseq
  %v1716 = vshrl.u32 %v1715, 7
  %v1717 = vsub.s32 6, %v1716
  %v1718 = vrot.slane %v1687, %v1717
  %v1719 = vlaneseq
  %v1720 = vshrl.u32 %v1719, 7
  %v1721 = vsub.s32 7, %v1720
  %v1722 = vrot.slane %v1687, %v1721
  %v1723 = vlaneseq
  %v1724 = vshrl.u32 %v1723, 7
  %v1725 = vsub.s32 0, %v1724
  %v1726 = vrot.slane %v1688, %v1725
  %v1727 = vlaneseq
  %v1728 = vshrl.u32 %v1727, 7
  %v1729 = vsub.s32 1, %v1728
  %v1730 = vrot.slane %v1688, %v1729
  %v1731 = vlaneseq
  %v1732 = vshrl.u32 %v1731, 7
  %v1733 = vsub.s32 2, %v1732
  %v1734 = vrot.slane %v1688, %v1733
  %v1735 = vlaneseq
  %v1736 = vshrl.u32 %v1735, 7
  %v1737 = vsub.s32 3, %v1736
  %v1738 = vrot.slane %v1688, %v1737
  %v1739 = vlaneseq
  %v1740 = vshrl.u32 %v1739, 7
  %v1741 = vsub.s32 4, %v1740
  %v1742 = vrot.slane %v1688, %v1741
  %v1743 = vlaneseq
  %v1744 = vshrl.u32 %v1743, 7
  %v1745 = vsub.s32 5, %v1744
  %v1746 = vrot.slane %v1688, %v1745
  %v1747 = vlaneseq
  %v1748 = vshrl.u32 %v1747, 7
  %v1749 = vsub.s32 6, %v1748
  %v1750 = vrot.slane %v1688, %v1749
  %v1751 = vlaneseq
  %v1752 = vshrl.u32 %v1751, 7
  %v1753 = vsub.s32 7, %v1752
  %v1754 = vrot.slane %v1688, %v1753
  %v1755 = vcombine.low %v1694, %v1698
  %v1756 = vcombine.low %v1702, %v1706
  %v1758 = vunpack.c.l.s4 1983009808
  %v1759 = vunpack.c.0.s8 %v1758
  %v1760 = vlaneseq
  %v1761 = vshrl.u32 %v1760, 7
  %v1762 = vsub.s32 %v1759, %v1761
  %v1763 = vrot.slane %v1755, %v1762
  %v1765 = vunpack.c.l.s4 1983009808
  %v1766 = vunpack.c.0.s8 %v1765
  %v1767 = vlaneseq
  %v1768 = vshrl.u32 %v1767, 7
  %v1769 = vsub.s32 %v1766, %v1768
  %v1770 = vrot.slane %v1756, %v1769
  %v1771 = vcombine.low %v1763, %v1770
  %v1772 = vcombine.low %v1710, %v1714
  %v1773 = vcombine.low %v1718, %v1722
  %v1775 = vunpack.c.l.s4 1983009808
  %v1776 = vunpack.c.0.s8 %v1775
  %v1777 = vlaneseq
  %v1778 = vshrl.u32 %v1777, 7
  %v1779 = vsub.s32 %v1776, %v1778
  %v1780 = vrot.slane %v1772, %v1779
  %v1782 = vunpack.c.l.s4 1983009808
  %v1783 = vunpack.c.0.s8 %v1782
  %v1784 = vlaneseq
  %v1785 = vshrl.u32 %v1784, 7
  %v1786 = vsub.s32 %v1783, %v1785
  %v1787 = vrot.slane %v1773, %v1786
  %v1788 = vcombine.low %v1780, %v1787
  %v1789 = vcombine.low %v1726, %v1730
  %v1790 = vcombine.low %v1734, %v1738
  %v1792 = vunpack.c.l.s4 1983009808
  %v1793 = vunpack.c.0.s8 %v1792
  %v1794 = vlaneseq
  %v1795 = vshrl.u32 %v1794, 7
  %v1796 = vsub.s32 %v1793, %v1795
  %v1797 = vrot.slane %v1789, %v1796
  %v1799 = vunpack.c.l.s4 1983009808
  %v1800 = vunpack.c.0.s8 %v1799
  %v1801 = vlaneseq
  %v1802 = vshrl.u32 %v1801, 7
  %v1803 = vsub.s32 %v1800, %v1802
  %v1804 = vrot.slane %v1790, %v1803
  %v1805 = vcombine.low %v1797, %v1804
  %v1806 = vcombine.low %v1742, %v1746
  %v1807 = vcombine.low %v1750, %v1754
  %v1809 = vunpack.c.l.s4 1983009808
  %v1810 = vunpack.c.0.s8 %v1809
  %v1811 = vlaneseq
  %v1812 = vshrl.u32 %v1811, 7
  %v1813 = vsub.s32 %v1810, %v1812
  %v1814 = vrot.slane %v1806, %v1813
  %v1816 = vunpack.c.l.s4 1983009808
  %v1817 = vunpack.c.0.s8 %v1816
  %v1818 = vlaneseq
  %v1819 = vshrl.u32 %v1818, 7
  %v1820 = vsub.s32 %v1817, %v1819
  %v1821 = vrot.slane %v1807, %v1820
  %v1822 = vcombine.low %v1814, %v1821
  %v1827 = vmul.f32 %v1683, %v1771
  %v1828 = vmul.f32 %v1684, %v1788
  %v1829 = vmul.f32 %v1685, %v1805
  %v1830 = vmul.f32 %v1686, %v1822
  %v1831 = vadd.f32 %v1679, %v1827
  %v1832 = vadd.f32 %v1680, %v1828
  %v1833 = vadd.f32 %v1681, %v1829
  %v1834 = vadd.f32 %v1682, %v1830
  %v1835 = vld [vmem:[%s0 + $0x180] sm:$0xff]
  %v1836 = vld [vmem:[%s0 + $0x188] sm:$0xff]
  %v1837 = vld [vmem:[%s0 + $0x190] sm:$0xff]
  %v1838 = vld [vmem:[%s0 + $0x198] sm:$0xff]
  %v1839 = vld [vmem:[%s1 + $0xc0] sm:$0xff]
  %v1840 = vld [vmem:[%s1 + $0xc8] sm:$0xff]
  %v1843 = vlaneseq
  %v1844 = vshrl.u32 %v1843, 7
  %v1845 = vsub.s32 0, %v1844
  %v1846 = vrot.slane %v1839, %v1845
  %v1847 = vlaneseq
  %v1848 = vshrl.u32 %v1847, 7
  %v1849 = vsub.s32 1, %v1848
  %v1850 = vrot.slane %v1839, %v1849
  %v1851 = vlaneseq
  %v1852 = vshrl.u32 %v1851, 7
  %v1853 = vsub.s32 2, %v1852
  %v1854 = vrot.slane %v1839, %v1853
  %v1855 = vlaneseq
  %v1856 = vshrl.u32 %v1855, 7
  %v1857 = vsub.s32 3, %v1856
  %v1858 = vrot.slane %v1839, %v1857
  %v1859 = vlaneseq
  %v1860 = vshrl.u32 %v1859, 7
  %v1861 = vsub.s32 4, %v1860
  %v1862 = vrot.slane %v1839, %v1861
  %v1863 = vlaneseq
  %v1864 = vshrl.u32 %v1863, 7
  %v1865 = vsub.s32 5, %v1864
  %v1866 = vrot.slane %v1839, %v1865
  %v1867 = vlaneseq
  %v1868 = vshrl.u32 %v1867, 7
  %v1869 = vsub.s32 6, %v1868
  %v1870 = vrot.slane %v1839, %v1869
  %v1871 = vlaneseq
  %v1872 = vshrl.u32 %v1871, 7
  %v1873 = vsub.s32 7, %v1872
  %v1874 = vrot.slane %v1839, %v1873
  %v1875 = vlaneseq
  %v1876 = vshrl.u32 %v1875, 7
  %v1877 = vsub.s32 0, %v1876
  %v1878 = vrot.slane %v1840, %v1877
  %v1879 = vlaneseq
  %v1880 = vshrl.u32 %v1879, 7
  %v1881 = vsub.s32 1, %v1880
  %v1882 = vrot.slane %v1840, %v1881
  %v1883 = vlaneseq
  %v1884 = vshrl.u32 %v1883, 7
  %v1885 = vsub.s32 2, %v1884
  %v1886 = vrot.slane %v1840, %v1885
  %v1887 = vlaneseq
  %v1888 = vshrl.u32 %v1887, 7
  %v1889 = vsub.s32 3, %v1888
  %v1890 = vrot.slane %v1840, %v1889
  %v1891 = vlaneseq
  %v1892 = vshrl.u32 %v1891, 7
  %v1893 = vsub.s32 4, %v1892
  %v1894 = vrot.slane %v1840, %v1893
  %v1895 = vlaneseq
  %v1896 = vshrl.u32 %v1895, 7
  %v1897 = vsub.s32 5, %v1896
  %v1898 = vrot.slane %v1840, %v1897
  %v1899 = vlaneseq
  %v1900 = vshrl.u32 %v1899, 7
  %v1901 = vsub.s32 6, %v1900
  %v1902 = vrot.slane %v1840, %v1901
  %v1903 = vlaneseq
  %v1904 = vshrl.u32 %v1903, 7
  %v1905 = vsub.s32 7, %v1904
  %v1906 = vrot.slane %v1840, %v1905
  %v1907 = vcombine.low %v1846, %v1850
  %v1908 = vcombine.low %v1854, %v1858
  %v1910 = vunpack.c.l.s4 1983009808
  %v1911 = vunpack.c.0.s8 %v1910
  %v1912 = vlaneseq
  %v1913 = vshrl.u32 %v1912, 7
  %v1914 = vsub.s32 %v1911, %v1913
  %v1915 = vrot.slane %v1907, %v1914
  %v1917 = vunpack.c.l.s4 1983009808
  %v1918 = vunpack.c.0.s8 %v1917
  %v1919 = vlaneseq
  %v1920 = vshrl.u32 %v1919, 7
  %v1921 = vsub.s32 %v1918, %v1920
  %v1922 = vrot.slane %v1908, %v1921
  %v1923 = vcombine.low %v1915, %v1922
  %v1924 = vcombine.low %v1862, %v1866
  %v1925 = vcombine.low %v1870, %v1874
  %v1927 = vunpack.c.l.s4 1983009808
  %v1928 = vunpack.c.0.s8 %v1927
  %v1929 = vlaneseq
  %v1930 = vshrl.u32 %v1929, 7
  %v1931 = vsub.s32 %v1928, %v1930
  %v1932 = vrot.slane %v1924, %v1931
  %v1934 = vunpack.c.l.s4 1983009808
  %v1935 = vunpack.c.0.s8 %v1934
  %v1936 = vlaneseq
  %v1937 = vshrl.u32 %v1936, 7
  %v1938 = vsub.s32 %v1935, %v1937
  %v1939 = vrot.slane %v1925, %v1938
  %v1940 = vcombine.low %v1932, %v1939
  %v1941 = vcombine.low %v1878, %v1882
  %v1942 = vcombine.low %v1886, %v1890
  %v1944 = vunpack.c.l.s4 1983009808
  %v1945 = vunpack.c.0.s8 %v1944
  %v1946 = vlaneseq
  %v1947 = vshrl.u32 %v1946, 7
  %v1948 = vsub.s32 %v1945, %v1947
  %v1949 = vrot.slane %v1941, %v1948
  %v1951 = vunpack.c.l.s4 1983009808
  %v1952 = vunpack.c.0.s8 %v1951
  %v1953 = vlaneseq
  %v1954 = vshrl.u32 %v1953, 7
  %v1955 = vsub.s32 %v1952, %v1954
  %v1956 = vrot.slane %v1942, %v1955
  %v1957 = vcombine.low %v1949, %v1956
  %v1958 = vcombine.low %v1894, %v1898
  %v1959 = vcombine.low %v1902, %v1906
  %v1961 = vunpack.c.l.s4 1983009808
  %v1962 = vunpack.c.0.s8 %v1961
  %v1963 = vlaneseq
  %v1964 = vshrl.u32 %v1963, 7
  %v1965 = vsub.s32 %v1962, %v1964
  %v1966 = vrot.slane %v1958, %v1965
  %v1968 = vunpack.c.l.s4 1983009808
  %v1969 = vunpack.c.0.s8 %v1968
  %v1970 = vlaneseq
  %v1971 = vshrl.u32 %v1970, 7
  %v1972 = vsub.s32 %v1969, %v1971
  %v1973 = vrot.slane %v1959, %v1972
  %v1974 = vcombine.low %v1966, %v1973
  %v1979 = vmul.f32 %v1835, %v1923
  %v1980 = vmul.f32 %v1836, %v1940
  %v1981 = vmul.f32 %v1837, %v1957
  %v1982 = vmul.f32 %v1838, %v1974
  %v1983 = vadd.f32 %v1831, %v1979
  %v1984 = vadd.f32 %v1832, %v1980
  %v1985 = vadd.f32 %v1833, %v1981
  %v1986 = vadd.f32 %v1834, %v1982
  %v1987 = vld [vmem:[%s0 + $0x1a0] sm:$0xff]
  %v1988 = vld [vmem:[%s0 + $0x1a8] sm:$0xff]
  %v1989 = vld [vmem:[%s0 + $0x1b0] sm:$0xff]
  %v1990 = vld [vmem:[%s0 + $0x1b8] sm:$0xff]
  %v1991 = vld [vmem:[%s1 + $0xd0] sm:$0xff]
  %v1992 = vld [vmem:[%s1 + $0xd8] sm:$0xff]
  %v1995 = vlaneseq
  %v1996 = vshrl.u32 %v1995, 7
  %v1997 = vsub.s32 0, %v1996
  %v1998 = vrot.slane %v1991, %v1997
  %v1999 = vlaneseq
  %v2000 = vshrl.u32 %v1999, 7
  %v2001 = vsub.s32 1, %v2000
  %v2002 = vrot.slane %v1991, %v2001
  %v2003 = vlaneseq
  %v2004 = vshrl.u32 %v2003, 7
  %v2005 = vsub.s32 2, %v2004
  %v2006 = vrot.slane %v1991, %v2005
  %v2007 = vlaneseq
  %v2008 = vshrl.u32 %v2007, 7
  %v2009 = vsub.s32 3, %v2008
  %v2010 = vrot.slane %v1991, %v2009
  %v2011 = vlaneseq
  %v2012 = vshrl.u32 %v2011, 7
  %v2013 = vsub.s32 4, %v2012
  %v2014 = vrot.slane %v1991, %v2013
  %v2015 = vlaneseq
  %v2016 = vshrl.u32 %v2015, 7
  %v2017 = vsub.s32 5, %v2016
  %v2018 = vrot.slane %v1991, %v2017
  %v2019 = vlaneseq
  %v2020 = vshrl.u32 %v2019, 7
  %v2021 = vsub.s32 6, %v2020
  %v2022 = vrot.slane %v1991, %v2021
  %v2023 = vlaneseq
  %v2024 = vshrl.u32 %v2023, 7
  %v2025 = vsub.s32 7, %v2024
  %v2026 = vrot.slane %v1991, %v2025
  %v2027 = vlaneseq
  %v2028 = vshrl.u32 %v2027, 7
  %v2029 = vsub.s32 0, %v2028
  %v2030 = vrot.slane %v1992, %v2029
  %v2031 = vlaneseq
  %v2032 = vshrl.u32 %v2031, 7
  %v2033 = vsub.s32 1, %v2032
  %v2034 = vrot.slane %v1992, %v2033
  %v2035 = vlaneseq
  %v2036 = vshrl.u32 %v2035, 7
  %v2037 = vsub.s32 2, %v2036
  %v2038 = vrot.slane %v1992, %v2037
  %v2039 = vlaneseq
  %v2040 = vshrl.u32 %v2039, 7
  %v2041 = vsub.s32 3, %v2040
  %v2042 = vrot.slane %v1992, %v2041
  %v2043 = vlaneseq
  %v2044 = vshrl.u32 %v2043, 7
  %v2045 = vsub.s32 4, %v2044
  %v2046 = vrot.slane %v1992, %v2045
  %v2047 = vlaneseq
  %v2048 = vshrl.u32 %v2047, 7
  %v2049 = vsub.s32 5, %v2048
  %v2050 = vrot.slane %v1992, %v2049
  %v2051 = vlaneseq
  %v2052 = vshrl.u32 %v2051, 7
  %v2053 = vsub.s32 6, %v2052
  %v2054 = vrot.slane %v1992, %v2053
  %v2055 = vlaneseq
  %v2056 = vshrl.u32 %v2055, 7
  %v2057 = vsub.s32 7, %v2056
  %v2058 = vrot.slane %v1992, %v2057
  %v2059 = vcombine.low %v1998, %v2002
  %v2060 = vcombine.low %v2006, %v2010
  %v2062 = vunpack.c.l.s4 1983009808
  %v2063 = vunpack.c.0.s8 %v2062
  %v2064 = vlaneseq
  %v2065 = vshrl.u32 %v2064, 7
  %v2066 = vsub.s32 %v2063, %v2065
  %v2067 = vrot.slane %v2059, %v2066
  %v2069 = vunpack.c.l.s4 1983009808
  %v2070 = vunpack.c.0.s8 %v2069
  %v2071 = vlaneseq
  %v2072 = vshrl.u32 %v2071, 7
  %v2073 = vsub.s32 %v2070, %v2072
  %v2074 = vrot.slane %v2060, %v2073
  %v2075 = vcombine.low %v2067, %v2074
  %v2076 = vcombine.low %v2014, %v2018
  %v2077 = vcombine.low %v2022, %v2026
  %v2079 = vunpack.c.l.s4 1983009808
  %v2080 = vunpack.c.0.s8 %v2079
  %v2081 = vlaneseq
  %v2082 = vshrl.u32 %v2081, 7
  %v2083 = vsub.s32 %v2080, %v2082
  %v2084 = vrot.slane %v2076, %v2083
  %v2086 = vunpack.c.l.s4 1983009808
  %v2087 = vunpack.c.0.s8 %v2086
  %v2088 = vlaneseq
  %v2089 = vshrl.u32 %v2088, 7
  %v2090 = vsub.s32 %v2087, %v2089
  %v2091 = vrot.slane %v2077, %v2090
  %v2092 = vcombine.low %v2084, %v2091
  %v2093 = vcombine.low %v2030, %v2034
  %v2094 = vcombine.low %v2038, %v2042
  %v2096 = vunpack.c.l.s4 1983009808
  %v2097 = vunpack.c.0.s8 %v2096
  %v2098 = vlaneseq
  %v2099 = vshrl.u32 %v2098, 7
  %v2100 = vsub.s32 %v2097, %v2099
  %v2101 = vrot.slane %v2093, %v2100
  %v2103 = vunpack.c.l.s4 1983009808
  %v2104 = vunpack.c.0.s8 %v2103
  %v2105 = vlaneseq
  %v2106 = vshrl.u32 %v2105, 7
  %v2107 = vsub.s32 %v2104, %v2106
  %v2108 = vrot.slane %v2094, %v2107
  %v2109 = vcombine.low %v2101, %v2108
  %v2110 = vcombine.low %v2046, %v2050
  %v2111 = vcombine.low %v2054, %v2058
  %v2113 = vunpack.c.l.s4 1983009808
  %v2114 = vunpack.c.0.s8 %v2113
  %v2115 = vlaneseq
  %v2116 = vshrl.u32 %v2115, 7
  %v2117 = vsub.s32 %v2114, %v2116
  %v2118 = vrot.slane %v2110, %v2117
  %v2120 = vunpack.c.l.s4 1983009808
  %v2121 = vunpack.c.0.s8 %v2120
  %v2122 = vlaneseq
  %v2123 = vshrl.u32 %v2122, 7
  %v2124 = vsub.s32 %v2121, %v2123
  %v2125 = vrot.slane %v2111, %v2124
  %v2126 = vcombine.low %v2118, %v2125
  %v2131 = vmul.f32 %v1987, %v2075
  %v2132 = vmul.f32 %v1988, %v2092
  %v2133 = vmul.f32 %v1989, %v2109
  %v2134 = vmul.f32 %v1990, %v2126
  %v2135 = vadd.f32 %v1983, %v2131
  %v2136 = vadd.f32 %v1984, %v2132
  %v2137 = vadd.f32 %v1985, %v2133
  %v2138 = vadd.f32 %v1986, %v2134
  %v2139 = vld [vmem:[%s0 + $0x1c0] sm:$0xff]
  %v2140 = vld [vmem:[%s0 + $0x1c8] sm:$0xff]
  %v2141 = vld [vmem:[%s0 + $0x1d0] sm:$0xff]
  %v2142 = vld [vmem:[%s0 + $0x1d8] sm:$0xff]
  %v2143 = vld [vmem:[%s1 + $0xe0] sm:$0xff]
  %v2144 = vld [vmem:[%s1 + $0xe8] sm:$0xff]
  %v2147 = vlaneseq
  %v2148 = vshrl.u32 %v2147, 7
  %v2149 = vsub.s32 0, %v2148
  %v2150 = vrot.slane %v2143, %v2149
  %v2151 = vlaneseq
  %v2152 = vshrl.u32 %v2151, 7
  %v2153 = vsub.s32 1, %v2152
  %v2154 = vrot.slane %v2143, %v2153
  %v2155 = vlaneseq
  %v2156 = vshrl.u32 %v2155, 7
  %v2157 = vsub.s32 2, %v2156
  %v2158 = vrot.slane %v2143, %v2157
  %v2159 = vlaneseq
  %v2160 = vshrl.u32 %v2159, 7
  %v2161 = vsub.s32 3, %v2160
  %v2162 = vrot.slane %v2143, %v2161
  %v2163 = vlaneseq
  %v2164 = vshrl.u32 %v2163, 7
  %v2165 = vsub.s32 4, %v2164
  %v2166 = vrot.slane %v2143, %v2165
  %v2167 = vlaneseq
  %v2168 = vshrl.u32 %v2167, 7
  %v2169 = vsub.s32 5, %v2168
  %v2170 = vrot.slane %v2143, %v2169
  %v2171 = vlaneseq
  %v2172 = vshrl.u32 %v2171, 7
  %v2173 = vsub.s32 6, %v2172
  %v2174 = vrot.slane %v2143, %v2173
  %v2175 = vlaneseq
  %v2176 = vshrl.u32 %v2175, 7
  %v2177 = vsub.s32 7, %v2176
  %v2178 = vrot.slane %v2143, %v2177
  %v2179 = vlaneseq
  %v2180 = vshrl.u32 %v2179, 7
  %v2181 = vsub.s32 0, %v2180
  %v2182 = vrot.slane %v2144, %v2181
  %v2183 = vlaneseq
  %v2184 = vshrl.u32 %v2183, 7
  %v2185 = vsub.s32 1, %v2184
  %v2186 = vrot.slane %v2144, %v2185
  %v2187 = vlaneseq
  %v2188 = vshrl.u32 %v2187, 7
  %v2189 = vsub.s32 2, %v2188
  %v2190 = vrot.slane %v2144, %v2189
  %v2191 = vlaneseq
  %v2192 = vshrl.u32 %v2191, 7
  %v2193 = vsub.s32 3, %v2192
  %v2194 = vrot.slane %v2144, %v2193
  %v2195 = vlaneseq
  %v2196 = vshrl.u32 %v2195, 7
  %v2197 = vsub.s32 4, %v2196
  %v2198 = vrot.slane %v2144, %v2197
  %v2199 = vlaneseq
  %v2200 = vshrl.u32 %v2199, 7
  %v2201 = vsub.s32 5, %v2200
  %v2202 = vrot.slane %v2144, %v2201
  %v2203 = vlaneseq
  %v2204 = vshrl.u32 %v2203, 7
  %v2205 = vsub.s32 6, %v2204
  %v2206 = vrot.slane %v2144, %v2205
  %v2207 = vlaneseq
  %v2208 = vshrl.u32 %v2207, 7
  %v2209 = vsub.s32 7, %v2208
  %v2210 = vrot.slane %v2144, %v2209
  %v2211 = vcombine.low %v2150, %v2154
  %v2212 = vcombine.low %v2158, %v2162
  %v2214 = vunpack.c.l.s4 1983009808
  %v2215 = vunpack.c.0.s8 %v2214
  %v2216 = vlaneseq
  %v2217 = vshrl.u32 %v2216, 7
  %v2218 = vsub.s32 %v2215, %v2217
  %v2219 = vrot.slane %v2211, %v2218
  %v2221 = vunpack.c.l.s4 1983009808
  %v2222 = vunpack.c.0.s8 %v2221
  %v2223 = vlaneseq
  %v2224 = vshrl.u32 %v2223, 7
  %v2225 = vsub.s32 %v2222, %v2224
  %v2226 = vrot.slane %v2212, %v2225
  %v2227 = vcombine.low %v2219, %v2226
  %v2228 = vcombine.low %v2166, %v2170
  %v2229 = vcombine.low %v2174, %v2178
  %v2231 = vunpack.c.l.s4 1983009808
  %v2232 = vunpack.c.0.s8 %v2231
  %v2233 = vlaneseq
  %v2234 = vshrl.u32 %v2233, 7
  %v2235 = vsub.s32 %v2232, %v2234
  %v2236 = vrot.slane %v2228, %v2235
  %v2238 = vunpack.c.l.s4 1983009808
  %v2239 = vunpack.c.0.s8 %v2238
  %v2240 = vlaneseq
  %v2241 = vshrl.u32 %v2240, 7
  %v2242 = vsub.s32 %v2239, %v2241
  %v2243 = vrot.slane %v2229, %v2242
  %v2244 = vcombine.low %v2236, %v2243
  %v2245 = vcombine.low %v2182, %v2186
  %v2246 = vcombine.low %v2190, %v2194
  %v2248 = vunpack.c.l.s4 1983009808
  %v2249 = vunpack.c.0.s8 %v2248
  %v2250 = vlaneseq
  %v2251 = vshrl.u32 %v2250, 7
  %v2252 = vsub.s32 %v2249, %v2251
  %v2253 = vrot.slane %v2245, %v2252
  %v2255 = vunpack.c.l.s4 1983009808
  %v2256 = vunpack.c.0.s8 %v2255
  %v2257 = vlaneseq
  %v2258 = vshrl.u32 %v2257, 7
  %v2259 = vsub.s32 %v2256, %v2258
  %v2260 = vrot.slane %v2246, %v2259
  %v2261 = vcombine.low %v2253, %v2260
  %v2262 = vcombine.low %v2198, %v2202
  %v2263 = vcombine.low %v2206, %v2210
  %v2265 = vunpack.c.l.s4 1983009808
  %v2266 = vunpack.c.0.s8 %v2265
  %v2267 = vlaneseq
  %v2268 = vshrl.u32 %v2267, 7
  %v2269 = vsub.s32 %v2266, %v2268
  %v2270 = vrot.slane %v2262, %v2269
  %v2272 = vunpack.c.l.s4 1983009808
  %v2273 = vunpack.c.0.s8 %v2272
  %v2274 = vlaneseq
  %v2275 = vshrl.u32 %v2274, 7
  %v2276 = vsub.s32 %v2273, %v2275
  %v2277 = vrot.slane %v2263, %v2276
  %v2278 = vcombine.low %v2270, %v2277
  %v2283 = vmul.f32 %v2139, %v2227
  %v2284 = vmul.f32 %v2140, %v2244
  %v2285 = vmul.f32 %v2141, %v2261
  %v2286 = vmul.f32 %v2142, %v2278
  %v2287 = vadd.f32 %v2135, %v2283
  %v2288 = vadd.f32 %v2136, %v2284
  %v2289 = vadd.f32 %v2137, %v2285
  %v2290 = vadd.f32 %v2138, %v2286
  %v2291 = vld [vmem:[%s0 + $0x1e0] sm:$0xff]
  %v2292 = vld [vmem:[%s0 + $0x1e8] sm:$0xff]
  %v2293 = vld [vmem:[%s0 + $0x1f0] sm:$0xff]
  %v2294 = vld [vmem:[%s0 + $0x1f8] sm:$0xff]
  %v2295 = vld [vmem:[%s1 + $0xf0] sm:$0xff]
  %v2296 = vld [vmem:[%s1 + $0xf8] sm:$0xff]
  %v2299 = vlaneseq
  %v2300 = vshrl.u32 %v2299, 7
  %v2301 = vsub.s32 0, %v2300
  %v2302 = vrot.slane %v2295, %v2301
  %v2303 = vlaneseq
  %v2304 = vshrl.u32 %v2303, 7
  %v2305 = vsub.s32 1, %v2304
  %v2306 = vrot.slane %v2295, %v2305
  %v2307 = vlaneseq
  %v2308 = vshrl.u32 %v2307, 7
  %v2309 = vsub.s32 2, %v2308
  %v2310 = vrot.slane %v2295, %v2309
  %v2311 = vlaneseq
  %v2312 = vshrl.u32 %v2311, 7
  %v2313 = vsub.s32 3, %v2312
  %v2314 = vrot.slane %v2295, %v2313
  %v2315 = vlaneseq
  %v2316 = vshrl.u32 %v2315, 7
  %v2317 = vsub.s32 4, %v2316
  %v2318 = vrot.slane %v2295, %v2317
  %v2319 = vlaneseq
  %v2320 = vshrl.u32 %v2319, 7
  %v2321 = vsub.s32 5, %v2320
  %v2322 = vrot.slane %v2295, %v2321
  %v2323 = vlaneseq
  %v2324 = vshrl.u32 %v2323, 7
  %v2325 = vsub.s32 6, %v2324
  %v2326 = vrot.slane %v2295, %v2325
  %v2327 = vlaneseq
  %v2328 = vshrl.u32 %v2327, 7
  %v2329 = vsub.s32 7, %v2328
  %v2330 = vrot.slane %v2295, %v2329
  %v2331 = vlaneseq
  %v2332 = vshrl.u32 %v2331, 7
  %v2333 = vsub.s32 0, %v2332
  %v2334 = vrot.slane %v2296, %v2333
  %v2335 = vlaneseq
  %v2336 = vshrl.u32 %v2335, 7
  %v2337 = vsub.s32 1, %v2336
  %v2338 = vrot.slane %v2296, %v2337
  %v2339 = vlaneseq
  %v2340 = vshrl.u32 %v2339, 7
  %v2341 = vsub.s32 2, %v2340
  %v2342 = vrot.slane %v2296, %v2341
  %v2343 = vlaneseq
  %v2344 = vshrl.u32 %v2343, 7
  %v2345 = vsub.s32 3, %v2344
  %v2346 = vrot.slane %v2296, %v2345
  %v2347 = vlaneseq
  %v2348 = vshrl.u32 %v2347, 7
  %v2349 = vsub.s32 4, %v2348
  %v2350 = vrot.slane %v2296, %v2349
  %v2351 = vlaneseq
  %v2352 = vshrl.u32 %v2351, 7
  %v2353 = vsub.s32 5, %v2352
  %v2354 = vrot.slane %v2296, %v2353
  %v2355 = vlaneseq
  %v2356 = vshrl.u32 %v2355, 7
  %v2357 = vsub.s32 6, %v2356
  %v2358 = vrot.slane %v2296, %v2357
  %v2359 = vlaneseq
  %v2360 = vshrl.u32 %v2359, 7
  %v2361 = vsub.s32 7, %v2360
  %v2362 = vrot.slane %v2296, %v2361
  %v2363 = vcombine.low %v2302, %v2306
  %v2364 = vcombine.low %v2310, %v2314
  %v2366 = vunpack.c.l.s4 1983009808
  %v2367 = vunpack.c.0.s8 %v2366
  %v2368 = vlaneseq
  %v2369 = vshrl.u32 %v2368, 7
  %v2370 = vsub.s32 %v2367, %v2369
  %v2371 = vrot.slane %v2363, %v2370
  %v2373 = vunpack.c.l.s4 1983009808
  %v2374 = vunpack.c.0.s8 %v2373
  %v2375 = vlaneseq
  %v2376 = vshrl.u32 %v2375, 7
  %v2377 = vsub.s32 %v2374, %v2376
  %v2378 = vrot.slane %v2364, %v2377
  %v2379 = vcombine.low %v2371, %v2378
  %v2380 = vcombine.low %v2318, %v2322
  %v2381 = vcombine.low %v2326, %v2330
  %v2383 = vunpack.c.l.s4 1983009808
  %v2384 = vunpack.c.0.s8 %v2383
  %v2385 = vlaneseq
  %v2386 = vshrl.u32 %v2385, 7
  %v2387 = vsub.s32 %v2384, %v2386
  %v2388 = vrot.slane %v2380, %v2387
  %v2390 = vunpack.c.l.s4 1983009808
  %v2391 = vunpack.c.0.s8 %v2390
  %v2392 = vlaneseq
  %v2393 = vshrl.u32 %v2392, 7
  %v2394 = vsub.s32 %v2391, %v2393
  %v2395 = vrot.slane %v2381, %v2394
  %v2396 = vcombine.low %v2388, %v2395
  %v2397 = vcombine.low %v2334, %v2338
  %v2398 = vcombine.low %v2342, %v2346
  %v2400 = vunpack.c.l.s4 1983009808
  %v2401 = vunpack.c.0.s8 %v2400
  %v2402 = vlaneseq
  %v2403 = vshrl.u32 %v2402, 7
  %v2404 = vsub.s32 %v2401, %v2403
  %v2405 = vrot.slane %v2397, %v2404
  %v2407 = vunpack.c.l.s4 1983009808
  %v2408 = vunpack.c.0.s8 %v2407
  %v2409 = vlaneseq
  %v2410 = vshrl.u32 %v2409, 7
  %v2411 = vsub.s32 %v2408, %v2410
  %v2412 = vrot.slane %v2398, %v2411
  %v2413 = vcombine.low %v2405, %v2412
  %v2414 = vcombine.low %v2350, %v2354
  %v2415 = vcombine.low %v2358, %v2362
  %v2417 = vunpack.c.l.s4 1983009808
  %v2418 = vunpack.c.0.s8 %v2417
  %v2419 = vlaneseq
  %v2420 = vshrl.u32 %v2419, 7
  %v2421 = vsub.s32 %v2418, %v2420
  %v2422 = vrot.slane %v2414, %v2421
  %v2424 = vunpack.c.l.s4 1983009808
  %v2425 = vunpack.c.0.s8 %v2424
  %v2426 = vlaneseq
  %v2427 = vshrl.u32 %v2426, 7
  %v2428 = vsub.s32 %v2425, %v2427
  %v2429 = vrot.slane %v2415, %v2428
  %v2430 = vcombine.low %v2422, %v2429
  %v2435 = vmul.f32 %v2291, %v2379
  %v2436 = vmul.f32 %v2292, %v2396
  %v2437 = vmul.f32 %v2293, %v2413
  %v2438 = vmul.f32 %v2294, %v2430
  %v2439 = vadd.f32 %v2287, %v2435
  %v2440 = vadd.f32 %v2288, %v2436
  %v2441 = vadd.f32 %v2289, %v2437
  %v2442 = vadd.f32 %v2290, %v2438
  %v2447 = vcombine.high %v2439, %v2439
  %v2449 = vunpack.c.l.s4 1983009808
  %v2450 = vunpack.c.0.s8 %v2449
  %v2451 = vlaneseq
  %v2452 = vshrl.u32 %v2451, 7
  %v2453 = vsub.s32 %v2450, %v2452
  %v2454 = vrot.slane %v2439, %v2453
  %v2456 = vunpack.c.l.s4 1983009808
  %v2457 = vunpack.c.0.s8 %v2456
  %v2458 = vlaneseq
  %v2459 = vshrl.u32 %v2458, 7
  %v2460 = vsub.s32 %v2457, %v2459
  %v2461 = vrot.slane %v2447, %v2460
  %v2462 = vcombine.high %v2454, %v2454
  %v2463 = vcombine.high %v2461, %v2461
  %v2464 = vcombine.high %v2440, %v2440
  %v2466 = vunpack.c.l.s4 1983009808
  %v2467 = vunpack.c.0.s8 %v2466
  %v2468 = vlaneseq
  %v2469 = vshrl.u32 %v2468, 7
  %v2470 = vsub.s32 %v2467, %v2469
  %v2471 = vrot.slane %v2440, %v2470
  %v2473 = vunpack.c.l.s4 1983009808
  %v2474 = vunpack.c.0.s8 %v2473
  %v2475 = vlaneseq
  %v2476 = vshrl.u32 %v2475, 7
  %v2477 = vsub.s32 %v2474, %v2476
  %v2478 = vrot.slane %v2464, %v2477
  %v2479 = vcombine.high %v2471, %v2471
  %v2480 = vcombine.high %v2478, %v2478
  %v2481 = vcombine.high %v2441, %v2441
  %v2483 = vunpack.c.l.s4 1983009808
  %v2484 = vunpack.c.0.s8 %v2483
  %v2485 = vlaneseq
  %v2486 = vshrl.u32 %v2485, 7
  %v2487 = vsub.s32 %v2484, %v2486
  %v2488 = vrot.slane %v2441, %v2487
  %v2490 = vunpack.c.l.s4 1983009808
  %v2491 = vunpack.c.0.s8 %v2490
  %v2492 = vlaneseq
  %v2493 = vshrl.u32 %v2492, 7
  %v2494 = vsub.s32 %v2491, %v2493
  %v2495 = vrot.slane %v2481, %v2494
  %v2496 = vcombine.high %v2488, %v2488
  %v2497 = vcombine.high %v2495, %v2495
  %v2498 = vcombine.high %v2442, %v2442
  %v2500 = vunpack.c.l.s4 1983009808
  %v2501 = vunpack.c.0.s8 %v2500
  %v2502 = vlaneseq
  %v2503 = vshrl.u32 %v2502, 7
  %v2504 = vsub.s32 %v2501, %v2503
  %v2505 = vrot.slane %v2442, %v2504
  %v2507 = vunpack.c.l.s4 1983009808
  %v2508 = vunpack.c.0.s8 %v2507
  %v2509 = vlaneseq
  %v2510 = vshrl.u32 %v2509, 7
  %v2511 = vsub.s32 %v2508, %v2510
  %v2512 = vrot.slane %v2498, %v2511
  %v2513 = vcombine.high %v2505, %v2505
  %v2514 = vcombine.high %v2512, %v2512
  %vm2531 = vcmask 1041408
  %v2532 = vsel %vm2531, %v2454, 0.0
  %v2533 = vsel %vm2531, %v2462, 0.0
  %v2534 = vadd.f32 %v2532, %v2533
  %v2535 = vsel %vm2531, %v2461, 0.0
  %v2536 = vadd.f32 %v2534, %v2535
  %v2537 = vsel %vm2531, %v2463, 0.0
  %v2538 = vadd.f32 %v2536, %v2537
  %v2539 = vsel %vm2531, %v2471, 0.0
  %v2540 = vadd.f32 %v2538, %v2539
  %v2541 = vsel %vm2531, %v2479, 0.0
  %v2542 = vadd.f32 %v2540, %v2541
  %v2543 = vsel %vm2531, %v2478, 0.0
  %v2544 = vadd.f32 %v2542, %v2543
  %v2545 = vsel %vm2531, %v2480, 0.0
  %v2546 = vadd.f32 %v2544, %v2545
  %v2547 = vsel %vm2531, %v2488, 0.0
  %v2548 = vadd.f32 %v2546, %v2547
  %v2549 = vsel %vm2531, %v2496, 0.0
  %v2550 = vadd.f32 %v2548, %v2549
  %v2551 = vsel %vm2531, %v2495, 0.0
  %v2552 = vadd.f32 %v2550, %v2551
  %v2553 = vsel %vm2531, %v2497, 0.0
  %v2554 = vadd.f32 %v2552, %v2553
  %v2555 = vsel %vm2531, %v2505, 0.0
  %v2556 = vadd.f32 %v2554, %v2555
  %v2557 = vsel %vm2531, %v2513, 0.0
  %v2558 = vadd.f32 %v2556, %v2557
  %v2559 = vsel %vm2531, %v2512, 0.0
  %v2560 = vadd.f32 %v2558, %v2559
  %v2561 = vsel %vm2531, %v2514, 0.0
  %v2562 = vadd.f32 %v2560, %v2561
  %2563 = vadd.xlane.f32.xlu0 %v2562
  %v2564 = vpop.xlane.xlu0 %2563
  %v2565 = vxor.u32 %v2564, 2147483648
  %v2566 = vmul.f32 %v2565, 1.442695
  %v2567 = vpow.pop %v2566
  %v2568 = vadd.f32 %v2567, 1.0
  %v2569 = vrcp.pop %v2568
  %v2570 = vmul.f32 1.0, %v2569
  %2571 = vst [vmem:[%s2] sm:$0x3] %v2570
  // Predicated region
  $region10: #{discriminator_forward.1} parent=0 // pred_check
    _
  $region11: #{discriminator_forward.1} parent=0 // pred_check_branch
    %2573 = sbr.rel (0) target = $region13
  $region12: #{discriminator_forward.1} parent=0 // pred_region
    _
  $region13: #{discriminator_forward.1} parent=0 // pred_fallthru
    _
  // Predicated region
  $region14: #{discriminator_forward.1} parent=0 // pred_check
    _
  $region15: #{discriminator_forward.1} parent=0 // pred_check_branch
    %2575 = sbr.rel (0) target = $region17
  $region16: #{discriminator_forward.1} parent=0 // pred_region
    _
  $region17: #{discriminator_forward.1} parent=0 // pred_fallthru
    _

</llo_original>
